<compile_context>
chip_gen: v7x
topology: tpu7x:2x2x1
jax: 0.10.0
libtpu: 0.0.40
codegen_flags: <defaults>
</compile_context>

<pallas_src>
import functools

import jax
import jax.numpy as jnp
from jax.experimental import pallas as pl
from jax.experimental.pallas import tpu as pltpu


def nrb_kernel(x_ref,
               w1_ref, b1_ref, w2_ref, b2_ref,
               caw1_ref, cab1_ref, caw2_ref, cab2_ref,
               tw_ref, tb_ref,
               o_ref, *, n):
    """One batch image per grid step. x_ref block: (1, C, HW)."""
    xb = x_ref[0]                      # (C, HW) f32 -- global residual
    t = xb
    for i in range(n):                 # n small & static -> unrolled
        c0 = t
        # RB.conv1 (1x1) + ReLU :  (C,C)@(C,HW) on the MXU, bf16 in / f32 acc
        h = jnp.dot(w1_ref[i], t.astype(jnp.bfloat16),
                    preferred_element_type=jnp.float32) + b1_ref[i]
        h = jnp.maximum(h, 0.0)
        # RB.conv2 (1x1)
        h = jnp.dot(w2_ref[i], h.astype(jnp.bfloat16),
                    preferred_element_type=jnp.float32) + b2_ref[i]
        # --- CALayer (tiny; keep off the MXU, use VPU/XLU) ---
        # adaptive avg pool over spatial (lane axis) -> (C, 1)
        y = jnp.mean(h, axis=1, keepdims=True)
        # conv_du[0]: C -> Cr, + ReLU   (broadcast-mul + sublane reduce)
        r = jnp.sum(y * caw1_ref[i], axis=0, keepdims=True) + cab1_ref[i]   # (1, Cr)
        r = jnp.maximum(r, 0.0)
        # conv_du[2]: Cr -> C, + Sigmoid (broadcast-mul + lane reduce)
        s = jnp.sum(r * caw2_ref[i], axis=1, keepdims=True) + cab2_ref[i]   # (C, 1)
        s = jax.nn.sigmoid(s)
        # channel-attention scale + RB residual (all f32)
        t = h * s + c0
    # tail 1x1 conv + global residual
    out = jnp.dot(tw_ref[...], t.astype(jnp.bfloat16),
                  preferred_element_type=jnp.float32) + tb_ref[...]
    o_ref[0] = out + xb


def nrb_forward(x_nchw, params, *, n):
    """x_nchw: (B, C, H, W) float32. Returns (B, C, H, W) float32."""
    B, C, H, W = x_nchw.shape
    HW = H * W
    Cr = params["caw1"].shape[-1]

    # NCHW is already channel-major -> just flatten spatial dims (no transpose).
    x = x_nchw.reshape(B, C, HW)

    # One-time bf16 cast of the MXU weights (halves weight DMA + VMEM footprint).
    w1 = params["w1"].astype(jnp.bfloat16)
    w2 = params["w2"].astype(jnp.bfloat16)
    tw = params["tw"].astype(jnp.bfloat16)

    kernel = functools.partial(nrb_kernel, n=n)

    def full(arr):
        nd = arr.ndim
        return pl.BlockSpec(arr.shape, lambda b, _nd=nd: (0,) * _nd)

    out = pl.pallas_call(
        kernel,
        out_shape=jax.ShapeDtypeStruct((B, C, HW), jnp.float32),
        grid_spec=pltpu.PrefetchScalarGridSpec(
            num_scalar_prefetch=0,
            grid=(B,),
            in_specs=[
                pl.BlockSpec((1, C, HW), lambda b: (b, 0, 0)),   # x
                full(w1),               # conv1 weights (n, C, C)  [out, in]
                full(params["b1"]),     # conv1 biases  (n, C, 1)
                full(w2),               # conv2 weights (n, C, C)
                full(params["b2"]),     # conv2 biases  (n, C, 1)
                full(params["caw1"]),   # CA conv_du[0] weights (n, C, Cr)  [in, out]
                full(params["cab1"]),   # CA conv_du[0] biases  (n, 1, Cr)
                full(params["caw2"]),   # CA conv_du[2] weights (n, C, Cr)  [out, in]
                full(params["cab2"]),   # CA conv_du[2] biases  (n, C, 1)
                full(tw),               # tail weight (C, C)
                full(params["tb"]),     # tail bias   (C, 1)
            ],
            out_specs=pl.BlockSpec((1, C, HW), lambda b: (b, 0, 0)),
        ),
        compiler_params=pltpu.CompilerParams(
            dimension_semantics=("parallel",),
            vmem_limit_bytes=64 * 1024 * 1024),
    )(x, w1, params["b1"], w2, params["b2"],
      params["caw1"], params["cab1"], params["caw2"], params["cab2"],
      tw, params["tb"])

    return out.reshape(B, C, H, W)


def nrb_reference(x_nchw, params, *, n, matmul_dtype=jnp.float32):
    """Pure-JAX reference in the same (B, C, HW) layout."""
    B, C, H, W = x_nchw.shape
    x = x_nchw.reshape(B, C, H * W)

    def mm(w, a):  # (out,in) @ (B,in,HW) -> (B,out,HW), f32 accumulation
        return jnp.einsum("oc,bcs->bos",
                          w.astype(matmul_dtype), a.astype(matmul_dtype),
                          preferred_element_type=jnp.float32)

    tmp = x
    t = x
    for i in range(n):
        c0 = t
        h = jnp.maximum(mm(params["w1"][i], t) + params["b1"][i], 0.0)
        h = mm(params["w2"][i], h) + params["b2"][i]
        y = jnp.mean(h, axis=2, keepdims=True)                       # (B, C, 1)
        r = jnp.sum(y * params["caw1"][i][None], axis=1, keepdims=True) \
            + params["cab1"][i]                                      # (B, 1, Cr)
        r = jnp.maximum(r, 0.0)
        s = jnp.sum(r * params["caw2"][i][None], axis=2, keepdims=True) \
            + params["cab2"][i]                                      # (B, C, 1)
        s = jax.nn.sigmoid(s)
        t = h * s + c0
    out = mm(params["tw"], t) + params["tb"] + tmp
    return out.reshape(B, C, H, W)


def make_params(key, n, C, reduction=16):
    Cr = max(C // reduction, 1)
    ks = jax.random.split(key, 10)
    scale = 0.1
    # 1x1 conv weights stored PyTorch-native (out_ch, in_ch); CA conv_du[0]
    # stored (in_ch, out_ch) so its tiny matmul is a sublane reduction on-chip.
    return {
        "w1":   scale * jax.random.normal(ks[0], (n, C, C), jnp.float32),
        "b1":   scale * jax.random.normal(ks[1], (n, C, 1), jnp.float32),
        "w2":   scale * jax.random.normal(ks[2], (n, C, C), jnp.float32),
        "b2":   scale * jax.random.normal(ks[3], (n, C, 1), jnp.float32),
        "caw1": scale * jax.random.normal(ks[4], (n, C, Cr), jnp.float32),
        "cab1": scale * jax.random.normal(ks[5], (n, 1, Cr), jnp.float32),
        "caw2": scale * jax.random.normal(ks[6], (n, C, Cr), jnp.float32),
        "cab2": scale * jax.random.normal(ks[7], (n, C, 1), jnp.float32),
        "tw":   scale * jax.random.normal(ks[8], (C, C), jnp.float32),
        "tb":   scale * jax.random.normal(ks[9], (C, 1), jnp.float32),
    }


if __name__ == "__main__":
    n = 2                       # number of RB blocks
    B, C, H, W = 2, 32, 16, 16  # filters=32 -> CA reduced channels = 32//16 = 2

    key = jax.random.PRNGKey(0)
    kx, kp = jax.random.split(key)
    x = jax.random.normal(kx, (B, C, H, W), jnp.float32)
    params = make_params(kp, n, C)

    out = nrb_forward(x, params, n=n)
    out = jax.block_until_ready(out)
    assert out.shape == x.shape

    # Strict check vs a reference that uses the same bf16 matmul operands.
    ref_bf16 = nrb_reference(x, params, n=n, matmul_dtype=jnp.bfloat16)
    assert jnp.allclose(out, ref_bf16, atol=1e-3, rtol=1e-3), \
        "mismatch vs bf16-matmul reference"

    # Loose check vs the exact f32 module semantics (bf16 rounding tolerance).
    ref_f32 = nrb_reference(x, params, n=n, matmul_dtype=jnp.float32)
    assert jnp.allclose(out, ref_f32, atol=5e-2, rtol=5e-2), \
        "mismatch vs f32 reference"

    print("KERNEL_OK")
</pallas_src>

<mosaic_0001>
module attributes {stable_mosaic.version = 11 : i64} {
  func.func @nrb_kernel(%arg0: i32, %arg1: memref<1x32x256xf32, #tpu.memory_space<vmem>>, %arg2: memref<2x32x32xbf16, #tpu.memory_space<vmem>>, %arg3: memref<2x32x1xf32, #tpu.memory_space<vmem>>, %arg4: memref<2x32x32xbf16, #tpu.memory_space<vmem>>, %arg5: memref<2x32x1xf32, #tpu.memory_space<vmem>>, %arg6: memref<2x32x2xf32, #tpu.memory_space<vmem>>, %arg7: memref<2x1x2xf32, #tpu.memory_space<vmem>>, %arg8: memref<2x32x2xf32, #tpu.memory_space<vmem>>, %arg9: memref<2x32x1xf32, #tpu.memory_space<vmem>>, %arg10: memref<32x32xbf16, #tpu.memory_space<vmem>>, %arg11: memref<32x1xf32, #tpu.memory_space<vmem>>, %arg12: memref<1x32x256xf32, #tpu.memory_space<vmem>>) attributes {dimension_semantics = [#tpu.dimension_semantics<parallel>], iteration_bounds = array<i64: 2>, scalar_prefetch = 0 : i64, scratch_operands = 0 : i64, tpu.core_type = #tpu.core_type<tc>, window_params = [{transform_indices = @transform_0, window_bounds = array<i64: 1, 32, 256>}, {pipeline_mode = #tpu.pipeline_mode<synchronous>, transform_indices = @transform_1, window_bounds = array<i64: 2, 32, 32>}, {pipeline_mode = #tpu.pipeline_mode<synchronous>, transform_indices = @transform_2, window_bounds = array<i64: 2, 32, 1>}, {pipeline_mode = #tpu.pipeline_mode<synchronous>, transform_indices = @transform_3, window_bounds = array<i64: 2, 32, 32>}, {pipeline_mode = #tpu.pipeline_mode<synchronous>, transform_indices = @transform_4, window_bounds = array<i64: 2, 32, 1>}, {pipeline_mode = #tpu.pipeline_mode<synchronous>, transform_indices = @transform_5, window_bounds = array<i64: 2, 32, 2>}, {pipeline_mode = #tpu.pipeline_mode<synchronous>, transform_indices = @transform_6, window_bounds = array<i64: 2, 1, 2>}, {pipeline_mode = #tpu.pipeline_mode<synchronous>, transform_indices = @transform_7, window_bounds = array<i64: 2, 32, 2>}, {pipeline_mode = #tpu.pipeline_mode<synchronous>, transform_indices = @transform_8, window_bounds = array<i64: 2, 32, 1>}, {pipeline_mode = #tpu.pipeline_mode<synchronous>, transform_indices = @transform_9, window_bounds = array<i64: 32, 32>}, {pipeline_mode = #tpu.pipeline_mode<synchronous>, transform_indices = @transform_10, window_bounds = array<i64: 32, 1>}, {transform_indices = @transform_11, window_bounds = array<i64: 1, 32, 256>}]} {
    %c0 = arith.constant 0 : index
    %c0_0 = arith.constant 0 : index
    %c0_1 = arith.constant 0 : index
    %0 = vector.load %arg1[%c0, %c0_0, %c0_1] : memref<1x32x256xf32, #tpu.memory_space<vmem>>, vector<1x32x256xf32>
    %1 = vector.shape_cast %0 : vector<1x32x256xf32> to vector<32x256xf32>
    %c0_2 = arith.constant 0 : index
    %c0_3 = arith.constant 0 : index
    %c0_4 = arith.constant 0 : index
    %2 = vector.load %arg2[%c0_2, %c0_3, %c0_4] : memref<2x32x32xbf16, #tpu.memory_space<vmem>>, vector<1x32x32xbf16>
    %3 = vector.shape_cast %2 : vector<1x32x32xbf16> to vector<32x32xbf16>
    %4 = arith.truncf %1 : vector<32x256xf32> to vector<32x256xbf16>
    %cst = arith.constant dense<0.000000e+00> : vector<32x256xf32>
    %5 = tpu.matmul %3, %4, %cst {dimension_numbers = #tpu.dot_dimension_numbers<[1], [0], [0], [1], [0, 0, 1, 1], [], []>} : vector<32x32xbf16>, vector<32x256xbf16>, vector<32x256xf32> -> vector<32x256xf32>
    %c0_5 = arith.constant 0 : index
    %c0_6 = arith.constant 0 : index
    %c0_7 = arith.constant 0 : index
    %6 = vector.load %arg3[%c0_5, %c0_6, %c0_7] : memref<2x32x1xf32, #tpu.memory_space<vmem>>, vector<1x32x1xf32>
    %7 = vector.shape_cast %6 : vector<1x32x1xf32> to vector<32x1xf32>
    %8 = vector.broadcast %7 : vector<32x1xf32> to vector<32x256xf32>
    %9 = arith.addf %5, %8 : vector<32x256xf32>
    %cst_8 = arith.constant 0.000000e+00 : f32
    %10 = vector.broadcast %cst_8 : f32 to vector<32x256xf32>
    %11 = arith.maximumf %9, %10 : vector<32x256xf32>
    %c0_9 = arith.constant 0 : index
    %c0_10 = arith.constant 0 : index
    %c0_11 = arith.constant 0 : index
    %12 = vector.load %arg4[%c0_9, %c0_10, %c0_11] : memref<2x32x32xbf16, #tpu.memory_space<vmem>>, vector<1x32x32xbf16>
    %13 = vector.shape_cast %12 : vector<1x32x32xbf16> to vector<32x32xbf16>
    %14 = arith.truncf %11 : vector<32x256xf32> to vector<32x256xbf16>
    %cst_12 = arith.constant dense<0.000000e+00> : vector<32x256xf32>
    %15 = tpu.matmul %13, %14, %cst_12 {dimension_numbers = #tpu.dot_dimension_numbers<[1], [0], [0], [1], [0, 0, 1, 1], [], []>} : vector<32x32xbf16>, vector<32x256xbf16>, vector<32x256xf32> -> vector<32x256xf32>
    %c0_13 = arith.constant 0 : index
    %c0_14 = arith.constant 0 : index
    %c0_15 = arith.constant 0 : index
    %16 = vector.load %arg5[%c0_13, %c0_14, %c0_15] : memref<2x32x1xf32, #tpu.memory_space<vmem>>, vector<1x32x1xf32>
    %17 = vector.shape_cast %16 : vector<1x32x1xf32> to vector<32x1xf32>
    %18 = vector.broadcast %17 : vector<32x1xf32> to vector<32x256xf32>
    %19 = arith.addf %15, %18 : vector<32x256xf32>
    %cst_16 = arith.constant dense<0.000000e+00> : vector<32xf32>
    %20 = vector.multi_reduction <add>, %19, %cst_16 [1] : vector<32x256xf32> to vector<32xf32>
    %21 = vector.shape_cast %20 : vector<32xf32> to vector<32x1xf32>
    %cst_17 = arith.constant 2.560000e+02 : f32
    %22 = vector.broadcast %cst_17 : f32 to vector<32x1xf32>
    %23 = arith.divf %21, %22 : vector<32x1xf32>
    %c0_18 = arith.constant 0 : index
    %c0_19 = arith.constant 0 : index
    %c0_20 = arith.constant 0 : index
    %24 = vector.load %arg6[%c0_18, %c0_19, %c0_20] : memref<2x32x2xf32, #tpu.memory_space<vmem>>, vector<1x32x2xf32>
    %25 = vector.shape_cast %24 : vector<1x32x2xf32> to vector<32x2xf32>
    %26 = vector.broadcast %23 : vector<32x1xf32> to vector<32x2xf32>
    %27 = arith.mulf %26, %25 : vector<32x2xf32>
    %cst_21 = arith.constant dense<0.000000e+00> : vector<2xf32>
    %28 = vector.multi_reduction <add>, %27, %cst_21 [0] : vector<32x2xf32> to vector<2xf32>
    %29 = vector.shape_cast %28 : vector<2xf32> to vector<1x2xf32>
    %c0_22 = arith.constant 0 : index
    %c0_23 = arith.constant 0 : index
    %c0_24 = arith.constant 0 : index
    %30 = vector.load %arg7[%c0_22, %c0_23, %c0_24] : memref<2x1x2xf32, #tpu.memory_space<vmem>>, vector<1x1x2xf32>
    %31 = vector.shape_cast %30 : vector<1x1x2xf32> to vector<1x2xf32>
    %32 = arith.addf %29, %31 : vector<1x2xf32>
    %cst_25 = arith.constant 0.000000e+00 : f32
    %33 = vector.broadcast %cst_25 : f32 to vector<1x2xf32>
    %34 = arith.maximumf %32, %33 : vector<1x2xf32>
    %c0_26 = arith.constant 0 : index
    %c0_27 = arith.constant 0 : index
    %c0_28 = arith.constant 0 : index
    %35 = vector.load %arg8[%c0_26, %c0_27, %c0_28] : memref<2x32x2xf32, #tpu.memory_space<vmem>>, vector<1x32x2xf32>
    %36 = vector.shape_cast %35 : vector<1x32x2xf32> to vector<32x2xf32>
    %37 = vector.broadcast %34 : vector<1x2xf32> to vector<32x2xf32>
    %38 = arith.mulf %37, %36 : vector<32x2xf32>
    %cst_29 = arith.constant dense<0.000000e+00> : vector<32xf32>
    %39 = vector.multi_reduction <add>, %38, %cst_29 [1] : vector<32x2xf32> to vector<32xf32>
    %40 = vector.shape_cast %39 : vector<32xf32> to vector<32x1xf32>
    %c0_30 = arith.constant 0 : index
    %c0_31 = arith.constant 0 : index
    %c0_32 = arith.constant 0 : index
    %41 = vector.load %arg9[%c0_30, %c0_31, %c0_32] : memref<2x32x1xf32, #tpu.memory_space<vmem>>, vector<1x32x1xf32>
    %42 = vector.shape_cast %41 : vector<1x32x1xf32> to vector<32x1xf32>
    %43 = arith.addf %40, %42 : vector<32x1xf32>
    %44 = arith.negf %43 : vector<32x1xf32>
    %45 = math.exp %44 : vector<32x1xf32>
    %cst_33 = arith.constant 1.000000e+00 : f32
    %46 = vector.broadcast %cst_33 : f32 to vector<32x1xf32>
    %47 = arith.addf %46, %45 : vector<32x1xf32>
    %48 = arith.divf %46, %47 : vector<32x1xf32>
    %49 = vector.broadcast %48 : vector<32x1xf32> to vector<32x256xf32>
    %50 = arith.mulf %19, %49 : vector<32x256xf32>
    %51 = arith.addf %50, %1 : vector<32x256xf32>
    %c1 = arith.constant 1 : index
    %c0_34 = arith.constant 0 : index
    %c0_35 = arith.constant 0 : index
    %52 = vector.load %arg2[%c1, %c0_34, %c0_35] : memref<2x32x32xbf16, #tpu.memory_space<vmem>>, vector<1x32x32xbf16>
    %53 = vector.shape_cast %52 : vector<1x32x32xbf16> to vector<32x32xbf16>
    %54 = arith.truncf %51 : vector<32x256xf32> to vector<32x256xbf16>
    %cst_36 = arith.constant dense<0.000000e+00> : vector<32x256xf32>
    %55 = tpu.matmul %53, %54, %cst_36 {dimension_numbers = #tpu.dot_dimension_numbers<[1], [0], [0], [1], [0, 0, 1, 1], [], []>} : vector<32x32xbf16>, vector<32x256xbf16>, vector<32x256xf32> -> vector<32x256xf32>
    %c1_37 = arith.constant 1 : index
    %c0_38 = arith.constant 0 : index
    %c0_39 = arith.constant 0 : index
    %56 = vector.load %arg3[%c1_37, %c0_38, %c0_39] : memref<2x32x1xf32, #tpu.memory_space<vmem>>, vector<1x32x1xf32>
    %57 = vector.shape_cast %56 : vector<1x32x1xf32> to vector<32x1xf32>
    %58 = vector.broadcast %57 : vector<32x1xf32> to vector<32x256xf32>
    %59 = arith.addf %55, %58 : vector<32x256xf32>
    %cst_40 = arith.constant 0.000000e+00 : f32
    %60 = vector.broadcast %cst_40 : f32 to vector<32x256xf32>
    %61 = arith.maximumf %59, %60 : vector<32x256xf32>
    %c1_41 = arith.constant 1 : index
    %c0_42 = arith.constant 0 : index
    %c0_43 = arith.constant 0 : index
    %62 = vector.load %arg4[%c1_41, %c0_42, %c0_43] : memref<2x32x32xbf16, #tpu.memory_space<vmem>>, vector<1x32x32xbf16>
    %63 = vector.shape_cast %62 : vector<1x32x32xbf16> to vector<32x32xbf16>
    %64 = arith.truncf %61 : vector<32x256xf32> to vector<32x256xbf16>
    %cst_44 = arith.constant dense<0.000000e+00> : vector<32x256xf32>
    %65 = tpu.matmul %63, %64, %cst_44 {dimension_numbers = #tpu.dot_dimension_numbers<[1], [0], [0], [1], [0, 0, 1, 1], [], []>} : vector<32x32xbf16>, vector<32x256xbf16>, vector<32x256xf32> -> vector<32x256xf32>
    %c1_45 = arith.constant 1 : index
    %c0_46 = arith.constant 0 : index
    %c0_47 = arith.constant 0 : index
    %66 = vector.load %arg5[%c1_45, %c0_46, %c0_47] : memref<2x32x1xf32, #tpu.memory_space<vmem>>, vector<1x32x1xf32>
    %67 = vector.shape_cast %66 : vector<1x32x1xf32> to vector<32x1xf32>
    %68 = vector.broadcast %67 : vector<32x1xf32> to vector<32x256xf32>
    %69 = arith.addf %65, %68 : vector<32x256xf32>
    %cst_48 = arith.constant dense<0.000000e+00> : vector<32xf32>
    %70 = vector.multi_reduction <add>, %69, %cst_48 [1] : vector<32x256xf32> to vector<32xf32>
    %71 = vector.shape_cast %70 : vector<32xf32> to vector<32x1xf32>
    %cst_49 = arith.constant 2.560000e+02 : f32
    %72 = vector.broadcast %cst_49 : f32 to vector<32x1xf32>
    %73 = arith.divf %71, %72 : vector<32x1xf32>
    %c1_50 = arith.constant 1 : index
    %c0_51 = arith.constant 0 : index
    %c0_52 = arith.constant 0 : index
    %74 = vector.load %arg6[%c1_50, %c0_51, %c0_52] : memref<2x32x2xf32, #tpu.memory_space<vmem>>, vector<1x32x2xf32>
    %75 = vector.shape_cast %74 : vector<1x32x2xf32> to vector<32x2xf32>
    %76 = vector.broadcast %73 : vector<32x1xf32> to vector<32x2xf32>
    %77 = arith.mulf %76, %75 : vector<32x2xf32>
    %cst_53 = arith.constant dense<0.000000e+00> : vector<2xf32>
    %78 = vector.multi_reduction <add>, %77, %cst_53 [0] : vector<32x2xf32> to vector<2xf32>
    %79 = vector.shape_cast %78 : vector<2xf32> to vector<1x2xf32>
    %c1_54 = arith.constant 1 : index
    %c0_55 = arith.constant 0 : index
    %c0_56 = arith.constant 0 : index
    %80 = vector.load %arg7[%c1_54, %c0_55, %c0_56] : memref<2x1x2xf32, #tpu.memory_space<vmem>>, vector<1x1x2xf32>
    %81 = vector.shape_cast %80 : vector<1x1x2xf32> to vector<1x2xf32>
    %82 = arith.addf %79, %81 : vector<1x2xf32>
    %cst_57 = arith.constant 0.000000e+00 : f32
    %83 = vector.broadcast %cst_57 : f32 to vector<1x2xf32>
    %84 = arith.maximumf %82, %83 : vector<1x2xf32>
    %c1_58 = arith.constant 1 : index
    %c0_59 = arith.constant 0 : index
    %c0_60 = arith.constant 0 : index
    %85 = vector.load %arg8[%c1_58, %c0_59, %c0_60] : memref<2x32x2xf32, #tpu.memory_space<vmem>>, vector<1x32x2xf32>
    %86 = vector.shape_cast %85 : vector<1x32x2xf32> to vector<32x2xf32>
    %87 = vector.broadcast %84 : vector<1x2xf32> to vector<32x2xf32>
    %88 = arith.mulf %87, %86 : vector<32x2xf32>
    %cst_61 = arith.constant dense<0.000000e+00> : vector<32xf32>
    %89 = vector.multi_reduction <add>, %88, %cst_61 [1] : vector<32x2xf32> to vector<32xf32>
    %90 = vector.shape_cast %89 : vector<32xf32> to vector<32x1xf32>
    %c1_62 = arith.constant 1 : index
    %c0_63 = arith.constant 0 : index
    %c0_64 = arith.constant 0 : index
    %91 = vector.load %arg9[%c1_62, %c0_63, %c0_64] : memref<2x32x1xf32, #tpu.memory_space<vmem>>, vector<1x32x1xf32>
    %92 = vector.shape_cast %91 : vector<1x32x1xf32> to vector<32x1xf32>
    %93 = arith.addf %90, %92 : vector<32x1xf32>
    %94 = arith.negf %93 : vector<32x1xf32>
    %95 = math.exp %94 : vector<32x1xf32>
    %cst_65 = arith.constant 1.000000e+00 : f32
    %96 = vector.broadcast %cst_65 : f32 to vector<32x1xf32>
    %97 = arith.addf %96, %95 : vector<32x1xf32>
    %98 = arith.divf %96, %97 : vector<32x1xf32>
    %99 = vector.broadcast %98 : vector<32x1xf32> to vector<32x256xf32>
    %100 = arith.mulf %69, %99 : vector<32x256xf32>
    %101 = arith.addf %100, %51 : vector<32x256xf32>
    %c0_66 = arith.constant 0 : index
    %c0_67 = arith.constant 0 : index
    %102 = vector.load %arg10[%c0_66, %c0_67] : memref<32x32xbf16, #tpu.memory_space<vmem>>, vector<32x32xbf16>
    %103 = arith.truncf %101 : vector<32x256xf32> to vector<32x256xbf16>
    %cst_68 = arith.constant dense<0.000000e+00> : vector<32x256xf32>
    %104 = tpu.matmul %102, %103, %cst_68 {dimension_numbers = #tpu.dot_dimension_numbers<[1], [0], [0], [1], [0, 0, 1, 1], [], []>} : vector<32x32xbf16>, vector<32x256xbf16>, vector<32x256xf32> -> vector<32x256xf32>
    %c0_69 = arith.constant 0 : index
    %c0_70 = arith.constant 0 : index
    %105 = vector.load %arg11[%c0_69, %c0_70] : memref<32x1xf32, #tpu.memory_space<vmem>>, vector<32x1xf32>
    %106 = vector.broadcast %105 : vector<32x1xf32> to vector<32x256xf32>
    %107 = arith.addf %104, %106 : vector<32x256xf32>
    %108 = arith.addf %107, %1 : vector<32x256xf32>
    %c0_71 = arith.constant 0 : index
    %c0_72 = arith.constant 0 : index
    %c0_73 = arith.constant 0 : index
    %109 = vector.load %arg12[%c0_71, %c0_72, %c0_73] : memref<1x32x256xf32, #tpu.memory_space<vmem>>, vector<1x32x256xf32>
    %110 = vector.shape_cast %109 : vector<1x32x256xf32> to vector<32x256xf32>
    %111 = vector.shape_cast %108 : vector<32x256xf32> to vector<1x32x256xf32>
    tpu.vector_store %arg12[%c0_71, %c0_72, %c0_73], %111 {strides = array<i32>} : memref<1x32x256xf32, #tpu.memory_space<vmem>>, vector<1x32x256xf32>,
    return
  }
  func.func @transform_0(%arg0: i32) -> (i32, i32, i32) {
    %c0_i32 = arith.constant 0 : i32
    %c0_i32_0 = arith.constant 0 : i32
    %c0_i32_1 = arith.constant 0 : i32
    return %arg0, %c0_i32, %c0_i32_0 : i32, i32, i32
  }
  func.func @transform_1(%arg0: i32) -> (i32, i32, i32) {
    %c0_i32 = arith.constant 0 : i32
    %c0_i32_0 = arith.constant 0 : i32
    %c0_i32_1 = arith.constant 0 : i32
    %c0_i32_2 = arith.constant 0 : i32
    return %c0_i32, %c0_i32_0, %c0_i32_1 : i32, i32, i32
  }
  func.func @transform_2(%arg0: i32) -> (i32, i32, i32) {
    %c0_i32 = arith.constant 0 : i32
    %c0_i32_0 = arith.constant 0 : i32
    %c0_i32_1 = arith.constant 0 : i32
    %c0_i32_2 = arith.constant 0 : i32
    return %c0_i32, %c0_i32_0, %c0_i32_1 : i32, i32, i32
  }
  func.func @transform_3(%arg0: i32) -> (i32, i32, i32) {
    %c0_i32 = arith.constant 0 : i32
    %c0_i32_0 = arith.constant 0 : i32
    %c0_i32_1 = arith.constant 0 : i32
    %c0_i32_2 = arith.constant 0 : i32
    return %c0_i32, %c0_i32_0, %c0_i32_1 : i32, i32, i32
  }
  func.func @transform_4(%arg0: i32) -> (i32, i32, i32) {
    %c0_i32 = arith.constant 0 : i32
    %c0_i32_0 = arith.constant 0 : i32
    %c0_i32_1 = arith.constant 0 : i32
    %c0_i32_2 = arith.constant 0 : i32
    return %c0_i32, %c0_i32_0, %c0_i32_1 : i32, i32, i32
  }
  func.func @transform_5(%arg0: i32) -> (i32, i32, i32) {
    %c0_i32 = arith.constant 0 : i32
    %c0_i32_0 = arith.constant 0 : i32
    %c0_i32_1 = arith.constant 0 : i32
    %c0_i32_2 = arith.constant 0 : i32
    return %c0_i32, %c0_i32_0, %c0_i32_1 : i32, i32, i32
  }
  func.func @transform_6(%arg0: i32) -> (i32, i32, i32) {
    %c0_i32 = arith.constant 0 : i32
    %c0_i32_0 = arith.constant 0 : i32
    %c0_i32_1 = arith.constant 0 : i32
    %c0_i32_2 = arith.constant 0 : i32
    return %c0_i32, %c0_i32_0, %c0_i32_1 : i32, i32, i32
  }
  func.func @transform_7(%arg0: i32) -> (i32, i32, i32) {
    %c0_i32 = arith.constant 0 : i32
    %c0_i32_0 = arith.constant 0 : i32
    %c0_i32_1 = arith.constant 0 : i32
    %c0_i32_2 = arith.constant 0 : i32
    return %c0_i32, %c0_i32_0, %c0_i32_1 : i32, i32, i32
  }
  func.func @transform_8(%arg0: i32) -> (i32, i32, i32) {
    %c0_i32 = arith.constant 0 : i32
    %c0_i32_0 = arith.constant 0 : i32
    %c0_i32_1 = arith.constant 0 : i32
    %c0_i32_2 = arith.constant 0 : i32
    return %c0_i32, %c0_i32_0, %c0_i32_1 : i32, i32, i32
  }
  func.func @transform_9(%arg0: i32) -> (i32, i32) {
    %c0_i32 = arith.constant 0 : i32
    %c0_i32_0 = arith.constant 0 : i32
    %c0_i32_1 = arith.constant 0 : i32
    return %c0_i32, %c0_i32_0 : i32, i32
  }
  func.func @transform_10(%arg0: i32) -> (i32, i32) {
    %c0_i32 = arith.constant 0 : i32
    %c0_i32_0 = arith.constant 0 : i32
    %c0_i32_1 = arith.constant 0 : i32
    return %c0_i32, %c0_i32_0 : i32, i32
  }
  func.func @transform_11(%arg0: i32) -> (i32, i32, i32) {
    %c0_i32 = arith.constant 0 : i32
    %c0_i32_0 = arith.constant 0 : i32
    %c0_i32_1 = arith.constant 0 : i32
    return %arg0, %c0_i32, %c0_i32_0 : i32, i32, i32
  }
}

</mosaic_0001>

<llo_original>
// kernel: tpu_custom_call.1
$region0: #{tpu_custom_call.1}
  #allocation0 [shape = 'u32[]', space=smem, size = 0x4, offset = 0x4, fixed_abs, tag = 'smem constant byte address 0x4 - core index']
  #allocation1 [shape = 'u32[144,128]{1,0:T(1,128)}', space=vmem, size = 0x12000, scoped, tag = 'internal scratch']
  %s0 = inlined_call_operand.hbm [shape: f32[2,32,256], index: 0, kind: input, shape index: {}]
  %s1 = inlined_call_operand.hbm [shape: bf16[2,32,32], index: 1, kind: input, shape index: {}]
  %s2 = inlined_call_operand.hbm [shape: f32[2,32,1], index: 2, kind: input, shape index: {}]
  %s3 = inlined_call_operand.hbm [shape: bf16[2,32,32], index: 3, kind: input, shape index: {}]
  %s4 = inlined_call_operand.hbm [shape: f32[2,32,1], index: 4, kind: input, shape index: {}]
  %s5 = inlined_call_operand.hbm [shape: f32[2,32,2], index: 5, kind: input, shape index: {}]
  %s6 = inlined_call_operand.hbm [shape: f32[2,1,2], index: 6, kind: input, shape index: {}]
  %s7 = inlined_call_operand.hbm [shape: f32[2,32,2], index: 7, kind: input, shape index: {}]
  %s8 = inlined_call_operand.hbm [shape: f32[2,32,1], index: 8, kind: input, shape index: {}]
  %s9 = inlined_call_operand.hbm [shape: bf16[32,32], index: 9, kind: input, shape index: {}]
  %s10 = inlined_call_operand.hbm [shape: f32[32,1], index: 10, kind: input, shape index: {}]
  %s11 = inlined_call_operand.hbm [shape: f32[2,32,256], index: 11, kind: output, shape index: {}]
  %s12 = sld [smem:[#allocation0]]
  $region121: #{tpu_custom_call.1} parent=0
    _
  %s14 = ssub.s32 1, %s12
  %s15 = scalar_select 0, %s14, %s12
  $region1: #{tpu_custom_call.1} parent=0
    #allocation2 [shape = 'u8[65536]{0}', space=vmem, size = 0x10000, scoped, tag = 'input window, operand 0']
    #allocation3 [shape = 's32[2]{0}', space=sflag, size = 0x8, scoped, tag = 'scoped memory for tpu_custom_call.1']
    #allocation4 [shape = 's32[2]{0}', space=sflag, size = 0x8, scoped, tag = 'scoped memory for tpu_custom_call.1']
    #allocation5 [shape = 'u8[16384]{0}', space=vmem, size = 0x4000, scoped, tag = 'input window, operand 1, single buffered']
    #allocation6 [shape = 's32[1]{0}', space=sflag, size = 0x4, scoped, tag = 'scoped memory for tpu_custom_call.1']
    #allocation7 [shape = 'u8[32768]{0}', space=vmem, size = 0x8000, scoped, tag = 'input window, operand 2, single buffered']
    #allocation8 [shape = 'u8[16384]{0}', space=vmem, size = 0x4000, scoped, tag = 'input window, operand 3, single buffered']
    #allocation9 [shape = 's32[1]{0}', space=sflag, size = 0x4, scoped, tag = 'scoped memory for tpu_custom_call.1']
    #allocation10 [shape = 'u8[32768]{0}', space=vmem, size = 0x8000, scoped, tag = 'input window, operand 4, single buffered']
    #allocation11 [shape = 'u8[32768]{0}', space=vmem, size = 0x8000, scoped, tag = 'input window, operand 5, single buffered']
    #allocation12 [shape = 's32[1]{0}', space=sflag, size = 0x4, scoped, tag = 'scoped memory for tpu_custom_call.1']
    #allocation13 [shape = 'u8[1024]{0}', space=vmem, size = 0x400, scoped, tag = 'input window, operand 6, single buffered']
    #allocation14 [shape = 'u8[32768]{0}', space=vmem, size = 0x8000, scoped, tag = 'input window, operand 7, single buffered']
    #allocation15 [shape = 's32[1]{0}', space=sflag, size = 0x4, scoped, tag = 'scoped memory for tpu_custom_call.1']
    #allocation16 [shape = 'u8[32768]{0}', space=vmem, size = 0x8000, scoped, tag = 'input window, operand 8, single buffered']
    #allocation17 [shape = 'u8[8192]{0}', space=vmem, size = 0x2000, scoped, tag = 'input window, operand 9, single buffered']
    #allocation18 [shape = 's32[1]{0}', space=sflag, size = 0x4, scoped, tag = 'scoped memory for tpu_custom_call.1']
    #allocation19 [shape = 'u8[16384]{0}', space=vmem, size = 0x4000, scoped, tag = 'input window, operand 10, single buffered']
    #allocation20 [shape = 'u8[65536]{0}', space=vmem, size = 0x10000, scoped, tag = 'output window, operand 0']
    %16 = vsyncpa [#allocation3], 0
    %s17 = scalar_lea.sflag [#allocation3], 1
    %18 = vsyncpa %s17, 0
    %19 = vsyncpa [#allocation6], 0
    %20 = vsyncpa [#allocation9], 0
    %21 = vsyncpa [#allocation12], 0
    %22 = vsyncpa [#allocation15], 0
    %23 = vsyncpa [#allocation18], 0
    %24 = vsyncpa [#allocation4], 0
    %s25 = scalar_lea.sflag [#allocation4], 1
    %26 = vsyncpa %s25, 0
    loop: start=0, step=1, limit=4
    $region2: #{tpu_custom_call.1} parent=1 // loop_pre_header
      _
    $region3: #{tpu_custom_call.1} parent=1 // loop_header
      %s28 = sphi 0, %s32
      %p29 = scmp.ge.s32.totalorder %s28, 4
      %s38 = sphi 0, %s40
      %s41 = sphi 0, %s38
      %s42 = sphi 0, %s41
      %s58 = sphi 0, %s42
      %s62 = sphi 0, %s62
      %s64 = sphi 0, %s62
      %s65 = sphi 0, %s64
      %s79 = sphi 0, %s65
      %s83 = sphi 0, %s83
      %s85 = sphi 0, %s83
      %s86 = sphi 0, %s85
      %s100 = sphi 0, %s86
      %s104 = sphi 0, %s104
      %s106 = sphi 0, %s104
      %s107 = sphi 0, %s106
      %s121 = sphi 0, %s107
      %s125 = sphi 0, %s125
      %s127 = sphi 0, %s125
      %s128 = sphi 0, %s127
      %s142 = sphi 0, %s128
      %s146 = sphi 0, %s146
      %s148 = sphi 0, %s146
      %s149 = sphi 0, %s148
      %s163 = sphi 0, %s149
      %s167 = sphi 0, %s167
      %s169 = sphi 0, %s167
      %s170 = sphi 0, %s169
      %s184 = sphi 0, %s170
      %s188 = sphi 0, %s188
      %s190 = sphi 0, %s188
      %s191 = sphi 0, %s190
      %s205 = sphi 0, %s191
      %s209 = sphi 0, %s209
      %s211 = sphi 0, %s209
      %s212 = sphi 0, %s211
      %s226 = sphi 0, %s212
      %s230 = sphi 0, %s230
      %s232 = sphi 0, %s230
      %s233 = sphi 0, %s232
      %s247 = sphi 0, %s233
      %s251 = sphi 0, %s251
      %s253 = sphi 0, %s251
      %s254 = sphi 0, %s253
      %s268 = sphi 0, %s254
      %s274 = sphi 0, %s276
      %s277 = sphi 0, %s274
      %s278 = sphi 0, %s277
      %s294 = sphi 0, %s278
    $region4: #{tpu_custom_call.1} parent=1 // loop_header_branch
      %31 = sbr.rel (%p29) target = $region8
    $region5: #{tpu_custom_call.1} parent=1 // loop_body
      %s33 = ssub.s32 %s28, 1
      %s34 = ssub.s32 %s28, 2
      %s35 = sadd.s32 %s28, 1
      %s36 = ssub.s32 %s28, %s35
      %p37 = scmp.eq.s32.totalorder %s36, 0
      %s39 = sadd.s32 %s38, 1
      %s40 = scalar_select %p37, %s38, %s39
      %p43 = pneg %p37
      %p44 = scmp.eq.s32.totalorder %s28, 1
      %p45 = por %p43, %p44
      %p46 = scmp.ne.s32.totalorder %s38, %s41
      %p47 = scmp.eq.s32.totalorder %s28, 0
      %p48 = por %p46, %p47
      %p49 = scmp.ne.s32.totalorder %s38, %s41
      %p50 = scmp.eq.s32.totalorder %s33, 1
      %p51 = por %p49, %p50
      %p52 = scmp.ne.s32.totalorder %s41, %s42
      %p53 = scmp.eq.s32.totalorder %s33, 0
      %p54 = por %p52, %p53
      %p55 = scmp.ne.s32.totalorder %s41, %s42
      %p56 = scmp.eq.s32.totalorder %s34, 1
      %p57 = por %p55, %p56
      %p59 = scmp.ne.s32.totalorder %s42, %s58
      %p60 = scmp.eq.s32.totalorder %s34, 0
      %p61 = por %p59, %p60
      %s63 = sadd.s32 %s62, 1
      %p66 = scmp.eq.s32.totalorder %s28, 1
      %p67 = scmp.ne.s32.totalorder %s62, %s64
      %p68 = scmp.eq.s32.totalorder %s28, 0
      %p69 = por %p67, %p68
      %p70 = scmp.ne.s32.totalorder %s62, %s64
      %p71 = scmp.eq.s32.totalorder %s33, 1
      %p72 = por %p70, %p71
      %p73 = scmp.ne.s32.totalorder %s64, %s65
      %p74 = scmp.eq.s32.totalorder %s33, 0
      %p75 = por %p73, %p74
      %p76 = scmp.ne.s32.totalorder %s64, %s65
      %p77 = scmp.eq.s32.totalorder %s34, 1
      %p78 = por %p76, %p77
      %p80 = scmp.ne.s32.totalorder %s65, %s79
      %p81 = scmp.eq.s32.totalorder %s34, 0
      %p82 = por %p80, %p81
      %s84 = sadd.s32 %s83, 1
      %p87 = scmp.eq.s32.totalorder %s28, 1
      %p88 = scmp.ne.s32.totalorder %s83, %s85
      %p89 = scmp.eq.s32.totalorder %s28, 0
      %p90 = por %p88, %p89
      %p91 = scmp.ne.s32.totalorder %s83, %s85
      %p92 = scmp.eq.s32.totalorder %s33, 1
      %p93 = por %p91, %p92
      %p94 = scmp.ne.s32.totalorder %s85, %s86
      %p95 = scmp.eq.s32.totalorder %s33, 0
      %p96 = por %p94, %p95
      %p97 = scmp.ne.s32.totalorder %s85, %s86
      %p98 = scmp.eq.s32.totalorder %s34, 1
      %p99 = por %p97, %p98
      %p101 = scmp.ne.s32.totalorder %s86, %s100
      %p102 = scmp.eq.s32.totalorder %s34, 0
      %p103 = por %p101, %p102
      %s105 = sadd.s32 %s104, 1
      %p108 = scmp.eq.s32.totalorder %s28, 1
      %p109 = scmp.ne.s32.totalorder %s104, %s106
      %p110 = scmp.eq.s32.totalorder %s28, 0
      %p111 = por %p109, %p110
      %p112 = scmp.ne.s32.totalorder %s104, %s106
      %p113 = scmp.eq.s32.totalorder %s33, 1
      %p114 = por %p112, %p113
      %p115 = scmp.ne.s32.totalorder %s106, %s107
      %p116 = scmp.eq.s32.totalorder %s33, 0
      %p117 = por %p115, %p116
      %p118 = scmp.ne.s32.totalorder %s106, %s107
      %p119 = scmp.eq.s32.totalorder %s34, 1
      %p120 = por %p118, %p119
      %p122 = scmp.ne.s32.totalorder %s107, %s121
      %p123 = scmp.eq.s32.totalorder %s34, 0
      %p124 = por %p122, %p123
      %s126 = sadd.s32 %s125, 1
      %p129 = scmp.eq.s32.totalorder %s28, 1
      %p130 = scmp.ne.s32.totalorder %s125, %s127
      %p131 = scmp.eq.s32.totalorder %s28, 0
      %p132 = por %p130, %p131
      %p133 = scmp.ne.s32.totalorder %s125, %s127
      %p134 = scmp.eq.s32.totalorder %s33, 1
      %p135 = por %p133, %p134
      %p136 = scmp.ne.s32.totalorder %s127, %s128
      %p137 = scmp.eq.s32.totalorder %s33, 0
      %p138 = por %p136, %p137
      %p139 = scmp.ne.s32.totalorder %s127, %s128
      %p140 = scmp.eq.s32.totalorder %s34, 1
      %p141 = por %p139, %p140
      %p143 = scmp.ne.s32.totalorder %s128, %s142
      %p144 = scmp.eq.s32.totalorder %s34, 0
      %p145 = por %p143, %p144
      %s147 = sadd.s32 %s146, 1
      %p150 = scmp.eq.s32.totalorder %s28, 1
      %p151 = scmp.ne.s32.totalorder %s146, %s148
      %p152 = scmp.eq.s32.totalorder %s28, 0
      %p153 = por %p151, %p152
      %p154 = scmp.ne.s32.totalorder %s146, %s148
      %p155 = scmp.eq.s32.totalorder %s33, 1
      %p156 = por %p154, %p155
      %p157 = scmp.ne.s32.totalorder %s148, %s149
      %p158 = scmp.eq.s32.totalorder %s33, 0
      %p159 = por %p157, %p158
      %p160 = scmp.ne.s32.totalorder %s148, %s149
      %p161 = scmp.eq.s32.totalorder %s34, 1
      %p162 = por %p160, %p161
      %p164 = scmp.ne.s32.totalorder %s149, %s163
      %p165 = scmp.eq.s32.totalorder %s34, 0
      %p166 = por %p164, %p165
      %s168 = sadd.s32 %s167, 1
      %p171 = scmp.eq.s32.totalorder %s28, 1
      %p172 = scmp.ne.s32.totalorder %s167, %s169
      %p173 = scmp.eq.s32.totalorder %s28, 0
      %p174 = por %p172, %p173
      %p175 = scmp.ne.s32.totalorder %s167, %s169
      %p176 = scmp.eq.s32.totalorder %s33, 1
      %p177 = por %p175, %p176
      %p178 = scmp.ne.s32.totalorder %s169, %s170
      %p179 = scmp.eq.s32.totalorder %s33, 0
      %p180 = por %p178, %p179
      %p181 = scmp.ne.s32.totalorder %s169, %s170
      %p182 = scmp.eq.s32.totalorder %s34, 1
      %p183 = por %p181, %p182
      %p185 = scmp.ne.s32.totalorder %s170, %s184
      %p186 = scmp.eq.s32.totalorder %s34, 0
      %p187 = por %p185, %p186
      %s189 = sadd.s32 %s188, 1
      %p192 = scmp.eq.s32.totalorder %s28, 1
      %p193 = scmp.ne.s32.totalorder %s188, %s190
      %p194 = scmp.eq.s32.totalorder %s28, 0
      %p195 = por %p193, %p194
      %p196 = scmp.ne.s32.totalorder %s188, %s190
      %p197 = scmp.eq.s32.totalorder %s33, 1
      %p198 = por %p196, %p197
      %p199 = scmp.ne.s32.totalorder %s190, %s191
      %p200 = scmp.eq.s32.totalorder %s33, 0
      %p201 = por %p199, %p200
      %p202 = scmp.ne.s32.totalorder %s190, %s191
      %p203 = scmp.eq.s32.totalorder %s34, 1
      %p204 = por %p202, %p203
      %p206 = scmp.ne.s32.totalorder %s191, %s205
      %p207 = scmp.eq.s32.totalorder %s34, 0
      %p208 = por %p206, %p207
      %s210 = sadd.s32 %s209, 1
      %p213 = scmp.eq.s32.totalorder %s28, 1
      %p214 = scmp.ne.s32.totalorder %s209, %s211
      %p215 = scmp.eq.s32.totalorder %s28, 0
      %p216 = por %p214, %p215
      %p217 = scmp.ne.s32.totalorder %s209, %s211
      %p218 = scmp.eq.s32.totalorder %s33, 1
      %p219 = por %p217, %p218
      %p220 = scmp.ne.s32.totalorder %s211, %s212
      %p221 = scmp.eq.s32.totalorder %s33, 0
      %p222 = por %p220, %p221
      %p223 = scmp.ne.s32.totalorder %s211, %s212
      %p224 = scmp.eq.s32.totalorder %s34, 1
      %p225 = por %p223, %p224
      %p227 = scmp.ne.s32.totalorder %s212, %s226
      %p228 = scmp.eq.s32.totalorder %s34, 0
      %p229 = por %p227, %p228
      %s231 = sadd.s32 %s230, 1
      %p234 = scmp.eq.s32.totalorder %s28, 1
      %p235 = scmp.ne.s32.totalorder %s230, %s232
      %p236 = scmp.eq.s32.totalorder %s28, 0
      %p237 = por %p235, %p236
      %p238 = scmp.ne.s32.totalorder %s230, %s232
      %p239 = scmp.eq.s32.totalorder %s33, 1
      %p240 = por %p238, %p239
      %p241 = scmp.ne.s32.totalorder %s232, %s233
      %p242 = scmp.eq.s32.totalorder %s33, 0
      %p243 = por %p241, %p242
      %p244 = scmp.ne.s32.totalorder %s232, %s233
      %p245 = scmp.eq.s32.totalorder %s34, 1
      %p246 = por %p244, %p245
      %p248 = scmp.ne.s32.totalorder %s233, %s247
      %p249 = scmp.eq.s32.totalorder %s34, 0
      %p250 = por %p248, %p249
      %s252 = sadd.s32 %s251, 1
      %p255 = scmp.eq.s32.totalorder %s28, 1
      %p256 = scmp.ne.s32.totalorder %s251, %s253
      %p257 = scmp.eq.s32.totalorder %s28, 0
      %p258 = por %p256, %p257
      %p259 = scmp.ne.s32.totalorder %s251, %s253
      %p260 = scmp.eq.s32.totalorder %s33, 1
      %p261 = por %p259, %p260
      %p262 = scmp.ne.s32.totalorder %s253, %s254
      %p263 = scmp.eq.s32.totalorder %s33, 0
      %p264 = por %p262, %p263
      %p265 = scmp.ne.s32.totalorder %s253, %s254
      %p266 = scmp.eq.s32.totalorder %s34, 1
      %p267 = por %p265, %p266
      %p269 = scmp.ne.s32.totalorder %s254, %s268
      %p270 = scmp.eq.s32.totalorder %s34, 0
      %p271 = por %p269, %p270
      %s272 = ssub.s32 %s28, %s35
      %p273 = scmp.eq.s32.totalorder %s272, 0
      %s275 = sadd.s32 %s274, 1
      %s276 = scalar_select %p273, %s274, %s275
      %p279 = pneg %p273
      %p280 = scmp.eq.s32.totalorder %s28, 1
      %p281 = por %p279, %p280
      %p282 = scmp.ne.s32.totalorder %s274, %s277
      %p283 = scmp.eq.s32.totalorder %s28, 0
      %p284 = por %p282, %p283
      %p285 = scmp.ne.s32.totalorder %s274, %s277
      %p286 = scmp.eq.s32.totalorder %s33, 1
      %p287 = por %p285, %p286
      %p288 = scmp.ne.s32.totalorder %s277, %s278
      %p289 = scmp.eq.s32.totalorder %s33, 0
      %p290 = por %p288, %p289
      %p291 = scmp.ne.s32.totalorder %s277, %s278
      %p292 = scmp.eq.s32.totalorder %s34, 1
      %p293 = por %p291, %p292
      %p295 = scmp.ne.s32.totalorder %s278, %s294
      %p296 = scmp.eq.s32.totalorder %s34, 0
      %p297 = por %p295, %p296
      %p298 = scmp.le.s32.totalorder 1, %s28
      %p299 = scmp.lt.s32.totalorder %s28, 3
      %p300 = pnand %p298, %p299
      %p301 = pneg %p300
      // Predicated region
      $region9: #{tpu_custom_call.1} parent=5 // pred_check
        _
      $region10: #{tpu_custom_call.1} parent=5 // pred_check_branch
        %303 = sbr.rel (%p300) target = $region12
      $region11: #{tpu_custom_call.1} parent=5 // pred_region
        %s304 = ssub.s32 %s28, 1
        // Predicated region
        $region13: #{tpu_custom_call.1} parent=11 // pred_check
          %p305 = pneg %p75
        $region14: #{tpu_custom_call.1} parent=11 // pred_check_branch
          %307 = sbr.rel (%p305) target = $region16
        $region15: #{tpu_custom_call.1} parent=11 // pred_region
          %s309 = ssub.s32 512, 512
          %310 = vsyncadd [#allocation6], %s309
          %s311 = sshll.u32 [#allocation5], 4
          %s312 = int_to_ptr.vmem [resolvable:$true] %s311
          %317 = dma.hbm_to_vmem [thread:$0]  %s1, 512, %s312, [#allocation6], 64, 64, 4
        $region16: #{tpu_custom_call.1} parent=11 // pred_fallthru
          _
        // Predicated region
        $region17: #{tpu_custom_call.1} parent=11 // pred_check
          %p318 = pneg %p96
        $region18: #{tpu_custom_call.1} parent=11 // pred_check_branch
          %320 = sbr.rel (%p318) target = $region20
        $region19: #{tpu_custom_call.1} parent=11 // pred_region
          %s322 = ssub.s32 1024, 1024
          %323 = vsyncadd [#allocation6], %s322
          %s324 = sshll.u32 [#allocation7], 4
          %s325 = int_to_ptr.vmem [resolvable:$true] %s324
          %330 = dma.hbm_to_vmem [thread:$0]  %s2, 1024, %s325, [#allocation6], 128, 128, 8
        $region20: #{tpu_custom_call.1} parent=11 // pred_fallthru
          _
        // Predicated region
        $region21: #{tpu_custom_call.1} parent=11 // pred_check
          %p331 = pneg %p117
        $region22: #{tpu_custom_call.1} parent=11 // pred_check_branch
          %333 = sbr.rel (%p331) target = $region24
        $region23: #{tpu_custom_call.1} parent=11 // pred_region
          %s335 = ssub.s32 512, 512
          %336 = vsyncadd [#allocation9], %s335
          %s337 = sshll.u32 [#allocation8], 4
          %s338 = int_to_ptr.vmem [resolvable:$true] %s337
          %343 = dma.hbm_to_vmem [thread:$0]  %s3, 512, %s338, [#allocation9], 64, 64, 4
        $region24: #{tpu_custom_call.1} parent=11 // pred_fallthru
          _
        // Predicated region
        $region25: #{tpu_custom_call.1} parent=11 // pred_check
          %p344 = pneg %p138
        $region26: #{tpu_custom_call.1} parent=11 // pred_check_branch
          %346 = sbr.rel (%p344) target = $region28
        $region27: #{tpu_custom_call.1} parent=11 // pred_region
          %s348 = ssub.s32 1024, 1024
          %349 = vsyncadd [#allocation9], %s348
          %s350 = sshll.u32 [#allocation10], 4
          %s351 = int_to_ptr.vmem [resolvable:$true] %s350
          %356 = dma.hbm_to_vmem [thread:$0]  %s4, 1024, %s351, [#allocation9], 128, 128, 8
        $region28: #{tpu_custom_call.1} parent=11 // pred_fallthru
          _
        // Predicated region
        $region29: #{tpu_custom_call.1} parent=11 // pred_check
          %p357 = pneg %p159
        $region30: #{tpu_custom_call.1} parent=11 // pred_check_branch
          %359 = sbr.rel (%p357) target = $region32
        $region31: #{tpu_custom_call.1} parent=11 // pred_region
          %s361 = ssub.s32 1024, 1024
          %362 = vsyncadd [#allocation12], %s361
          %s363 = sshll.u32 [#allocation11], 4
          %s364 = int_to_ptr.vmem [resolvable:$true] %s363
          %369 = dma.hbm_to_vmem [thread:$0]  %s5, 1024, %s364, [#allocation12], 128, 128, 8
        $region32: #{tpu_custom_call.1} parent=11 // pred_fallthru
          _
        // Predicated region
        $region33: #{tpu_custom_call.1} parent=11 // pred_check
          %p370 = pneg %p180
        $region34: #{tpu_custom_call.1} parent=11 // pred_check_branch
          %372 = sbr.rel (%p370) target = $region36
        $region35: #{tpu_custom_call.1} parent=11 // pred_region
          %s374 = ssub.s32 32, 32
          %375 = vsyncadd [#allocation12], %s374
          %s376 = sshll.u32 [#allocation13], 4
          %s377 = int_to_ptr.vmem [resolvable:$true] %s376
          %382 = dma.hbm_to_vmem [thread:$0]  %s6, 32, %s377, [#allocation12], 16, 16, 1
        $region36: #{tpu_custom_call.1} parent=11 // pred_fallthru
          _
        // Predicated region
        $region37: #{tpu_custom_call.1} parent=11 // pred_check
          %p383 = pneg %p201
        $region38: #{tpu_custom_call.1} parent=11 // pred_check_branch
          %385 = sbr.rel (%p383) target = $region40
        $region39: #{tpu_custom_call.1} parent=11 // pred_region
          %s387 = ssub.s32 1024, 1024
          %388 = vsyncadd [#allocation15], %s387
          %s389 = sshll.u32 [#allocation14], 4
          %s390 = int_to_ptr.vmem [resolvable:$true] %s389
          %395 = dma.hbm_to_vmem [thread:$0]  %s7, 1024, %s390, [#allocation15], 128, 128, 8
        $region40: #{tpu_custom_call.1} parent=11 // pred_fallthru
          _
        // Predicated region
        $region41: #{tpu_custom_call.1} parent=11 // pred_check
          %p396 = pneg %p222
        $region42: #{tpu_custom_call.1} parent=11 // pred_check_branch
          %398 = sbr.rel (%p396) target = $region44
        $region43: #{tpu_custom_call.1} parent=11 // pred_region
          %s400 = ssub.s32 1024, 1024
          %401 = vsyncadd [#allocation15], %s400
          %s402 = sshll.u32 [#allocation16], 4
          %s403 = int_to_ptr.vmem [resolvable:$true] %s402
          %408 = dma.hbm_to_vmem [thread:$0]  %s8, 1024, %s403, [#allocation15], 128, 128, 8
        $region44: #{tpu_custom_call.1} parent=11 // pred_fallthru
          _
        // Predicated region
        $region45: #{tpu_custom_call.1} parent=11 // pred_check
          %p409 = pneg %p243
        $region46: #{tpu_custom_call.1} parent=11 // pred_check_branch
          %411 = sbr.rel (%p409) target = $region48
        $region47: #{tpu_custom_call.1} parent=11 // pred_region
          %s413 = ssub.s32 256, 256
          %414 = vsyncadd [#allocation18], %s413
          %s415 = sshll.u32 [#allocation17], 4
          %s416 = int_to_ptr.vmem [resolvable:$true] %s415
          %421 = dma.hbm_to_vmem [thread:$0]  %s9, 256, %s416, [#allocation18], 64, 64, 4
        $region48: #{tpu_custom_call.1} parent=11 // pred_fallthru
          _
        // Predicated region
        $region49: #{tpu_custom_call.1} parent=11 // pred_check
          %p422 = pneg %p264
        $region50: #{tpu_custom_call.1} parent=11 // pred_check_branch
          %424 = sbr.rel (%p422) target = $region52
        $region51: #{tpu_custom_call.1} parent=11 // pred_region
          %s426 = ssub.s32 512, 512
          %427 = vsyncadd [#allocation18], %s426
          %s428 = sshll.u32 [#allocation19], 4
          %s429 = int_to_ptr.vmem [resolvable:$true] %s428
          %434 = dma.hbm_to_vmem [thread:$0]  %s10, 512, %s429, [#allocation18], 128, 128, 8
        $region52: #{tpu_custom_call.1} parent=11 // pred_fallthru
          _
      $region12: #{tpu_custom_call.1} parent=5 // pred_fallthru
        _
      %p435 = scmp.lt.s32.totalorder %s28, 2
      // Predicated region
      $region53: #{tpu_custom_call.1} parent=5 // pred_check
        %p436 = pneg %p435
      $region54: #{tpu_custom_call.1} parent=5 // pred_check_branch
        %438 = sbr.rel (%p436) target = $region56
      $region55: #{tpu_custom_call.1} parent=5 // pred_region
        // Predicated region
        $region57: #{tpu_custom_call.1} parent=55 // pred_check
          %p439 = pneg %p48
        $region58: #{tpu_custom_call.1} parent=55 // pred_check_branch
          %441 = sbr.rel (%p439) target = $region60
        $region59: #{tpu_custom_call.1} parent=55 // pred_region
          %s442 = sand.u32 %s38, 1
          %s443 = scalar_lea.sflag [#allocation3], %s442
          %s444 = sand.u32 %s38, 1
          %s445 = smul.addr %s444, 64
          %s446 = scalar_lea.vmem [#allocation2], %s445
          %s448 = ssub.s32 1024, 1024
          %449 = vsyncadd %s443, %s448
          %s450 = smul.addr %s28, 8
          %s451 = smul.addr %s450, 128
          %s452 = scalar_lea.hbm %s0, %s451
          %s453 = sshll.u32 %s446, 4
          %s454 = int_to_ptr.vmem [resolvable:$true] %s453
          %459 = dma.hbm_to_vmem [thread:$0]  %s452, 1024, %s454, %s443, 256, 256, 16
        $region60: #{tpu_custom_call.1} parent=55 // pred_fallthru
          _
      $region56: #{tpu_custom_call.1} parent=5 // pred_fallthru
        _
      %p460 = scmp.le.s32.totalorder 1, %s28
      %p461 = scmp.lt.s32.totalorder %s28, 3
      %p462 = pnand %p460, %p461
      %p463 = pneg %p462
      // Predicated region
      $region61: #{tpu_custom_call.1} parent=5 // pred_check
        _
      $region62: #{tpu_custom_call.1} parent=5 // pred_check_branch
        %465 = sbr.rel (%p462) target = $region64
      $region63: #{tpu_custom_call.1} parent=5 // pred_region
        %s466 = ssub.s32 %s28, 1
        %s467 = sand.u32 %s41, 1
        %s468 = scalar_lea.sflag [#allocation3], %s467
        %s469 = sand.u32 %s41, 1
        %s470 = smul.addr %s469, 64
        %s471 = scalar_lea.vmem [#allocation2], %s470
        // Predicated region
        $region65: #{tpu_custom_call.1} parent=63 // pred_check
          %p472 = pneg %p54
        $region66: #{tpu_custom_call.1} parent=63 // pred_check_branch
          %474 = sbr.rel (%p472) target = $region68
        $region67: #{tpu_custom_call.1} parent=63 // pred_region
          %475 = dma.done %s468, 1024
        $region68: #{tpu_custom_call.1} parent=63 // pred_fallthru
          _
        // Predicated region
        $region69: #{tpu_custom_call.1} parent=63 // pred_check
          %p476 = pneg %p75
        $region70: #{tpu_custom_call.1} parent=63 // pred_check_branch
          %478 = sbr.rel (%p476) target = $region72
        $region71: #{tpu_custom_call.1} parent=63 // pred_region
          %479 = dma.done [#allocation6], 512
        $region72: #{tpu_custom_call.1} parent=63 // pred_fallthru
          _
        // Predicated region
        $region73: #{tpu_custom_call.1} parent=63 // pred_check
          %p480 = pneg %p96
        $region74: #{tpu_custom_call.1} parent=63 // pred_check_branch
          %482 = sbr.rel (%p480) target = $region76
        $region75: #{tpu_custom_call.1} parent=63 // pred_region
          %483 = dma.done [#allocation6], 1024
        $region76: #{tpu_custom_call.1} parent=63 // pred_fallthru
          _
        // Predicated region
        $region77: #{tpu_custom_call.1} parent=63 // pred_check
          %p484 = pneg %p117
        $region78: #{tpu_custom_call.1} parent=63 // pred_check_branch
          %486 = sbr.rel (%p484) target = $region80
        $region79: #{tpu_custom_call.1} parent=63 // pred_region
          %487 = dma.done [#allocation9], 512
        $region80: #{tpu_custom_call.1} parent=63 // pred_fallthru
          _
        // Predicated region
        $region81: #{tpu_custom_call.1} parent=63 // pred_check
          %p488 = pneg %p138
        $region82: #{tpu_custom_call.1} parent=63 // pred_check_branch
          %490 = sbr.rel (%p488) target = $region84
        $region83: #{tpu_custom_call.1} parent=63 // pred_region
          %491 = dma.done [#allocation9], 1024
        $region84: #{tpu_custom_call.1} parent=63 // pred_fallthru
          _
        // Predicated region
        $region85: #{tpu_custom_call.1} parent=63 // pred_check
          %p492 = pneg %p159
        $region86: #{tpu_custom_call.1} parent=63 // pred_check_branch
          %494 = sbr.rel (%p492) target = $region88
        $region87: #{tpu_custom_call.1} parent=63 // pred_region
          %495 = dma.done [#allocation12], 1024
        $region88: #{tpu_custom_call.1} parent=63 // pred_fallthru
          _
        // Predicated region
        $region89: #{tpu_custom_call.1} parent=63 // pred_check
          %p496 = pneg %p180
        $region90: #{tpu_custom_call.1} parent=63 // pred_check_branch
          %498 = sbr.rel (%p496) target = $region92
        $region91: #{tpu_custom_call.1} parent=63 // pred_region
          %499 = dma.done [#allocation12], 32
        $region92: #{tpu_custom_call.1} parent=63 // pred_fallthru
          _
        // Predicated region
        $region93: #{tpu_custom_call.1} parent=63 // pred_check
          %p500 = pneg %p201
        $region94: #{tpu_custom_call.1} parent=63 // pred_check_branch
          %502 = sbr.rel (%p500) target = $region96
        $region95: #{tpu_custom_call.1} parent=63 // pred_region
          %503 = dma.done [#allocation15], 1024
        $region96: #{tpu_custom_call.1} parent=63 // pred_fallthru
          _
        // Predicated region
        $region97: #{tpu_custom_call.1} parent=63 // pred_check
          %p504 = pneg %p222
        $region98: #{tpu_custom_call.1} parent=63 // pred_check_branch
          %506 = sbr.rel (%p504) target = $region100
        $region99: #{tpu_custom_call.1} parent=63 // pred_region
          %507 = dma.done [#allocation15], 1024
        $region100: #{tpu_custom_call.1} parent=63 // pred_fallthru
          _
        // Predicated region
        $region101: #{tpu_custom_call.1} parent=63 // pred_check
          %p508 = pneg %p243
        $region102: #{tpu_custom_call.1} parent=63 // pred_check_branch
          %510 = sbr.rel (%p508) target = $region104
        $region103: #{tpu_custom_call.1} parent=63 // pred_region
          %511 = dma.done [#allocation18], 256
        $region104: #{tpu_custom_call.1} parent=63 // pred_fallthru
          _
        // Predicated region
        $region105: #{tpu_custom_call.1} parent=63 // pred_check
          %p512 = pneg %p264
        $region106: #{tpu_custom_call.1} parent=63 // pred_check_branch
          %514 = sbr.rel (%p512) target = $region108
        $region107: #{tpu_custom_call.1} parent=63 // pred_region
          %515 = dma.done [#allocation18], 512
        $region108: #{tpu_custom_call.1} parent=63 // pred_fallthru
          _
        %s516 = sand.u32 %s41, 1
        %s517 = scalar_lea.sflag [#allocation3], %s516
        %s518 = sand.u32 %s41, 1
        %s519 = smul.addr %s518, 64
        %s520 = scalar_lea.vmem [#allocation2], %s519
        %p521 = pneg %p54
        %p522 = pneg %p51
        %p523 = pneg %p75
        %p524 = pneg %p72
        %p525 = pneg %p96
        %p526 = pneg %p93
        %p527 = pneg %p117
        %p528 = pneg %p114
        %p529 = pneg %p138
        %p530 = pneg %p135
        %p531 = pneg %p159
        %p532 = pneg %p156
        %p533 = pneg %p180
        %p534 = pneg %p177
        %p535 = pneg %p201
        %p536 = pneg %p198
        %p537 = pneg %p222
        %p538 = pneg %p219
        %p539 = pneg %p243
        %p540 = pneg %p240
        %p541 = pneg %p264
        %p542 = pneg %p261
        %p543 = pneg %p290
        %p544 = pneg %p287
        %s545 = sand.u32 %s277, 1
        %s546 = scalar_lea.sflag [#allocation4], %s545
        %s547 = sand.u32 %s277, 1
        %s548 = smul.addr %s547, 64
        %s549 = scalar_lea.vmem [#allocation20], %s548
        %v551 = vld [vmem:[%s471] sm:$0xff]
        %v552 = vld [vmem:[%s471 + $0x8] sm:$0xff]
        %v553 = vld [vmem:[%s471 + $0x10] sm:$0xff]
        %v554 = vld [vmem:[%s471 + $0x18] sm:$0xff]
        %v555 = vld [vmem:[%s471 + $0x20] sm:$0xff]
        %v556 = vld [vmem:[%s471 + $0x28] sm:$0xff]
        %v557 = vld [vmem:[%s471 + $0x30] sm:$0xff]
        %v558 = vld [vmem:[%s471 + $0x38] sm:$0xff]
        %v559 = vld [vmem:[#allocation5] sm:$0xf]
        %v560 = vld [vmem:[#allocation5 + $0x4] sm:$0xf]
        %v561 = vld [vmem:[#allocation5 + $0x8] sm:$0xf]
        %v562 = vld [vmem:[#allocation5 + $0xc] sm:$0xf]
        %v563 = vpack.c.bf16 %v553, %v551
        %v564 = vpack.c.bf16 %v554, %v552
        %v565 = vpack.c.bf16 %v557, %v555
        %v566 = vpack.c.bf16 %v558, %v556
        %v567 = vld [vmem:[#allocation7] sm:$0xff]
        %v568 = vld [vmem:[#allocation7 + $0x8] sm:$0xff]
        %v569 = vld [vmem:[#allocation7 + $0x10] sm:$0xff]
        %v570 = vld [vmem:[#allocation7 + $0x18] sm:$0xff]
        %572 = vset.pattern.permute.xlu0 0
        %573 = vperm.xlu0 %572, %v567
        %v574 = vpop.permute.xlu0 %573
        %577 = vset.pattern.permute.xlu0 0
        %578 = vperm.xlu0 %577, %v568
        %v579 = vpop.permute.xlu0 %578
        %582 = vset.pattern.permute.xlu0 0
        %583 = vperm.xlu0 %582, %v569
        %v584 = vpop.permute.xlu0 %583
        %587 = vset.pattern.permute.xlu0 0
        %588 = vperm.xlu0 %587, %v570
        %v589 = vpop.permute.xlu0 %588
        %v595 = vunpack.c.l.b16 %v559
        %v596 = vunpack.c.l.b16 %v560
        %v597 = vunpack.c.l.b16 %v561
        %v598 = vunpack.c.l.b16 %v562
        %v599 = vpack.c.b16 %v596, %v595
        %v600 = vpack.c.b16 %v598, %v597
        %vm601 = vcmask 261120
        %v603 = vsel %vm601, %v599, 0
        %v606 = vsel %vm601, %v600, 0
        %608 = vmatprep.subr.bf16.mxu0 %v564
        %609 = vmatpush1.bf16.msra.mxu0 %v563
        %610 = vmatprep.subr.bf16.mxu0 %v566
        %611 = vmatpush1.bf16.msra.mxu0 %v565
        %612 = vmatprep.subr.bf16.mxu0 0
        %613 = vmatpush1.bf16.msra.mxu0 0
        %614 = vmatprep.subr.bf16.mxu0 0
        %615 = vmatpush1.bf16.msra.mxu0 0
        %616 = vmatprep.subr.bf16.mxu0 0
        %617 = vmatpush1.bf16.msra.mxu0 0
        %618 = vmatprep.subr.bf16.mxu0 0
        %619 = vmatpush1.bf16.msra.mxu0 0
        %620 = vmatprep.subr.bf16.mxu0 0
        %621 = vmatpush1.bf16.msra.mxu0 0
        %622 = vmatprep.subr.bf16.mxu0 0
        %623 = vmatpush1.bf16.msra.mxu0 0
        %624 = vmatprep.subr.bf16.mxu0 0
        %625 = vmatpush1.bf16.msra.mxu0 0
        %626 = vmatprep.subr.bf16.mxu0 0
        %627 = vmatpush1.bf16.msra.mxu0 0
        %628 = vmatprep.subr.bf16.mxu0 0
        %629 = vmatpush1.bf16.msra.mxu0 0
        %630 = vmatprep.subr.bf16.mxu0 0
        %631 = vmatpush1.bf16.msra.mxu0 0
        %632 = vmatprep.subr.bf16.mxu0 0
        %633 = vmatpush1.bf16.msra.mxu0 0
        %634 = vmatprep.subr.bf16.mxu0 0
        %635 = vmatpush1.bf16.msra.mxu0 0
        %636 = vmatprep.subr.bf16.mxu0 0
        %637 = vmatpush1.bf16.msra.mxu0 0
        %638 = vmatprep.subr.bf16.mxu0 0
        %639 = vmatpush1.bf16.msra.mxu0 0
        %640 = vmatprep.mubr.bf16.mxu0 0
        %641 = vmatmul.mubr.bf16.gmra.mrb[0].mxu0 %v603
        %v642 = vpop.f32.mrb[0].mxu0
        %v643 = vadd.f32 %v574, %v642
        %v644 = vpop.f32.mrb[0].mxu0
        %v645 = vadd.f32 %v574, %v644
        %v646 = vpop.f32.mrb[0].mxu0
        %v647 = vadd.f32 %v579, %v646
        %v648 = vpop.f32.mrb[0].mxu0
        %v649 = vadd.f32 %v579, %v648
        %650 = vmatprep.mubr.bf16.mxu0 0
        %651 = vmatmul.mubr.bf16.gmra.mrb[0].mxu0 %v606
        %v652 = vpop.f32.mrb[0].mxu0
        %v653 = vadd.f32 %v584, %v652
        %v654 = vpop.f32.mrb[0].mxu0
        %v655 = vadd.f32 %v584, %v654
        %v656 = vpop.f32.mrb[0].mxu0
        %v657 = vadd.f32 %v589, %v656
        %v658 = vpop.f32.mrb[0].mxu0
        %v659 = vadd.f32 %v589, %v658
        %660 = vdwg.mxu0
        %v661 = vmax.f32 %v643, 0.0
        %v662 = vmax.f32 %v645, 0.0
        %v663 = vmax.f32 %v647, 0.0
        %v664 = vmax.f32 %v649, 0.0
        %v665 = vmax.f32 %v653, 0.0
        %v666 = vmax.f32 %v655, 0.0
        %v667 = vmax.f32 %v657, 0.0
        %v668 = vmax.f32 %v659, 0.0
        %v669 = vld [vmem:[#allocation8] sm:$0xf]
        %v670 = vld [vmem:[#allocation8 + $0x4] sm:$0xf]
        %v671 = vld [vmem:[#allocation8 + $0x8] sm:$0xf]
        %v672 = vld [vmem:[#allocation8 + $0xc] sm:$0xf]
        %v673 = vpack.c.bf16 %v663, %v661
        %v674 = vpack.c.bf16 %v664, %v662
        %v675 = vpack.c.bf16 %v667, %v665
        %v676 = vpack.c.bf16 %v668, %v666
        %v677 = vld [vmem:[#allocation10] sm:$0xff]
        %v678 = vld [vmem:[#allocation10 + $0x8] sm:$0xff]
        %v679 = vld [vmem:[#allocation10 + $0x10] sm:$0xff]
        %v680 = vld [vmem:[#allocation10 + $0x18] sm:$0xff]
        %682 = vset.pattern.permute.xlu0 0
        %683 = vperm.xlu0 %682, %v677
        %v684 = vpop.permute.xlu0 %683
        %687 = vset.pattern.permute.xlu0 0
        %688 = vperm.xlu0 %687, %v678
        %v689 = vpop.permute.xlu0 %688
        %692 = vset.pattern.permute.xlu0 0
        %693 = vperm.xlu0 %692, %v679
        %v694 = vpop.permute.xlu0 %693
        %697 = vset.pattern.permute.xlu0 0
        %698 = vperm.xlu0 %697, %v680
        %v699 = vpop.permute.xlu0 %698
        %v705 = vunpack.c.l.b16 %v669
        %v706 = vunpack.c.l.b16 %v670
        %v707 = vunpack.c.l.b16 %v671
        %v708 = vunpack.c.l.b16 %v672
        %v709 = vpack.c.b16 %v706, %v705
        %v710 = vpack.c.b16 %v708, %v707
        %v712 = vsel %vm601, %v709, 0
        %v715 = vsel %vm601, %v710, 0
        %717 = vmatprep.subr.bf16.mxu0 %v674
        %718 = vmatpush1.bf16.msra.mxu0 %v673
        %719 = vmatprep.subr.bf16.mxu0 %v676
        %720 = vmatpush1.bf16.msra.mxu0 %v675
        %721 = vmatprep.subr.bf16.mxu0 0
        %722 = vmatpush1.bf16.msra.mxu0 0
        %723 = vmatprep.subr.bf16.mxu0 0
        %724 = vmatpush1.bf16.msra.mxu0 0
        %725 = vmatprep.subr.bf16.mxu0 0
        %726 = vmatpush1.bf16.msra.mxu0 0
        %727 = vmatprep.subr.bf16.mxu0 0
        %728 = vmatpush1.bf16.msra.mxu0 0
        %729 = vmatprep.subr.bf16.mxu0 0
        %730 = vmatpush1.bf16.msra.mxu0 0
        %731 = vmatprep.subr.bf16.mxu0 0
        %732 = vmatpush1.bf16.msra.mxu0 0
        %733 = vmatprep.subr.bf16.mxu0 0
        %734 = vmatpush1.bf16.msra.mxu0 0
        %735 = vmatprep.subr.bf16.mxu0 0
        %736 = vmatpush1.bf16.msra.mxu0 0
        %737 = vmatprep.subr.bf16.mxu0 0
        %738 = vmatpush1.bf16.msra.mxu0 0
        %739 = vmatprep.subr.bf16.mxu0 0
        %740 = vmatpush1.bf16.msra.mxu0 0
        %741 = vmatprep.subr.bf16.mxu0 0
        %742 = vmatpush1.bf16.msra.mxu0 0
        %743 = vmatprep.subr.bf16.mxu0 0
        %744 = vmatpush1.bf16.msra.mxu0 0
        %745 = vmatprep.subr.bf16.mxu0 0
        %746 = vmatpush1.bf16.msra.mxu0 0
        %747 = vmatprep.subr.bf16.mxu0 0
        %748 = vmatpush1.bf16.msra.mxu0 0
        %749 = vmatprep.mubr.bf16.mxu0 0
        %750 = vmatmul.mubr.bf16.gmra.mrb[0].mxu0 %v712
        %v751 = vpop.f32.mrb[0].mxu0
        %v752 = vadd.f32 %v684, %v751
        %v753 = vpop.f32.mrb[0].mxu0
        %v754 = vadd.f32 %v684, %v753
        %v755 = vpop.f32.mrb[0].mxu0
        %v756 = vadd.f32 %v689, %v755
        %v757 = vpop.f32.mrb[0].mxu0
        %v758 = vadd.f32 %v689, %v757
        %759 = vmatprep.mubr.bf16.mxu0 0
        %760 = vmatmul.mubr.bf16.gmra.mrb[0].mxu0 %v715
        %v761 = vpop.f32.mrb[0].mxu0
        %v762 = vadd.f32 %v694, %v761
        %v763 = vpop.f32.mrb[0].mxu0
        %v764 = vadd.f32 %v694, %v763
        %v765 = vpop.f32.mrb[0].mxu0
        %v766 = vadd.f32 %v699, %v765
        %v767 = vpop.f32.mrb[0].mxu0
        %v768 = vadd.f32 %v699, %v767
        %769 = vdwg.mxu0
        %v770 = vadd.f32 %v752, %v754
        %771 = vadd.xlane.f32.xlu0 %v770
        %v772 = vpop.xlane.xlu0 %771
        %v773 = vadd.f32 %v756, %v758
        %774 = vadd.xlane.f32.xlu0 %v773
        %v775 = vpop.xlane.xlu0 %774
        %v776 = vadd.f32 %v762, %v764
        %777 = vadd.xlane.f32.xlu0 %v776
        %v778 = vpop.xlane.xlu0 %777
        %v779 = vadd.f32 %v766, %v768
        %780 = vadd.xlane.f32.xlu0 %v779
        %v781 = vpop.xlane.xlu0 %780
        %v782 = vrcp.pop 256.0
        %v783 = vmul.f32 %v772, %v782
        %v784 = vmul.f32 %v775, %v782
        %v785 = vmul.f32 %v778, %v782
        %v786 = vmul.f32 %v781, %v782
        %v787 = vld [vmem:[#allocation11] sm:$0xff]
        %v788 = vld [vmem:[#allocation11 + $0x8] sm:$0xff]
        %v789 = vld [vmem:[#allocation11 + $0x10] sm:$0xff]
        %v790 = vld [vmem:[#allocation11 + $0x18] sm:$0xff]
        %v791 = vmul.f32 %v783, %v787
        %v792 = vmul.f32 %v784, %v788
        %v793 = vmul.f32 %v785, %v789
        %v794 = vmul.f32 %v786, %v790
        %vm795 = vcmask 15360
        %v796 = vsel %vm795, %v791, 0.0
        %v797 = vsel %vm795, %v792, 0.0
        %v798 = vadd.f32 %v796, %v797
        %v799 = vsel %vm795, %v793, 0.0
        %v800 = vadd.f32 %v798, %v799
        %v801 = vsel %vm795, %v794, 0.0
        %v802 = vadd.f32 %v800, %v801
        %v803 = vrot.slane %v802, 4
        %v804 = vadd.f32 %v802, %v803
        %v805 = vrot.slane %v804, 2
        %v806 = vadd.f32 %v804, %v805
        %v807 = vrot.slane %v806, 1
        %v808 = vadd.f32 %v806, %v807
        %v809 = vld [vmem:[#allocation13] sm:$0x1]
        %v810 = vadd.f32 %v808, %v809
        %v811 = vmax.f32 %v810, 0.0
        %v812 = vld [vmem:[#allocation14] sm:$0xff]
        %v813 = vld [vmem:[#allocation14 + $0x8] sm:$0xff]
        %v814 = vld [vmem:[#allocation14 + $0x10] sm:$0xff]
        %v815 = vld [vmem:[#allocation14 + $0x18] sm:$0xff]
        %v816 = vlaneseq
        %v817 = vshrl.u32 %v816, 7
        %v818 = vsub.s32 0, %v817
        %v819 = vrot.slane %v811, %v818
        %v820 = vmul.f32 %v819, %v812
        %v821 = vmul.f32 %v819, %v813
        %v822 = vmul.f32 %v819, %v814
        %v823 = vmul.f32 %v819, %v815
        %v824 = vsel %vm795, %v820, 0.0
        %825 = vadd.xlane.f32.xlu0 %v824
        %v826 = vpop.xlane.xlu0 %825
        %v827 = vsel %vm795, %v821, 0.0
        %828 = vadd.xlane.f32.xlu0 %v827
        %v829 = vpop.xlane.xlu0 %828
        %v830 = vsel %vm795, %v822, 0.0
        %831 = vadd.xlane.f32.xlu0 %v830
        %v832 = vpop.xlane.xlu0 %831
        %v833 = vsel %vm795, %v823, 0.0
        %834 = vadd.xlane.f32.xlu0 %v833
        %v835 = vpop.xlane.xlu0 %834
        %v836 = vld [vmem:[#allocation16] sm:$0xff]
        %v837 = vld [vmem:[#allocation16 + $0x8] sm:$0xff]
        %v838 = vld [vmem:[#allocation16 + $0x10] sm:$0xff]
        %v839 = vld [vmem:[#allocation16 + $0x18] sm:$0xff]
        %v840 = vadd.f32 %v826, %v836
        %v841 = vadd.f32 %v829, %v837
        %v842 = vadd.f32 %v832, %v838
        %v843 = vadd.f32 %v835, %v839
        %v844 = vxor.u32 %v840, 2147483648
        %v845 = vxor.u32 %v841, 2147483648
        %v846 = vxor.u32 %v842, 2147483648
        %v847 = vxor.u32 %v843, 2147483648
        %v848 = vmul.f32 %v844, 1.442695
        %v849 = vpow.pop %v848
        %v850 = vmul.f32 %v845, 1.442695
        %v851 = vpow.pop %v850
        %v852 = vmul.f32 %v846, 1.442695
        %v853 = vpow.pop %v852
        %v854 = vmul.f32 %v847, 1.442695
        %v855 = vpow.pop %v854
        %v856 = vadd.f32 %v849, 1.0
        %v857 = vadd.f32 %v851, 1.0
        %v858 = vadd.f32 %v853, 1.0
        %v859 = vadd.f32 %v855, 1.0
        %v860 = vrcp.pop %v856
        %v861 = vmul.f32 1.0, %v860
        %v862 = vrcp.pop %v857
        %v863 = vmul.f32 1.0, %v862
        %v864 = vrcp.pop %v858
        %v865 = vmul.f32 1.0, %v864
        %v866 = vrcp.pop %v859
        %v867 = vmul.f32 1.0, %v866
        %869 = vset.pattern.permute.xlu0 0
        %870 = vperm.xlu0 %869, %v861
        %v871 = vpop.permute.xlu0 %870
        %874 = vset.pattern.permute.xlu0 0
        %875 = vperm.xlu0 %874, %v863
        %v876 = vpop.permute.xlu0 %875
        %879 = vset.pattern.permute.xlu0 0
        %880 = vperm.xlu0 %879, %v865
        %v881 = vpop.permute.xlu0 %880
        %884 = vset.pattern.permute.xlu0 0
        %885 = vperm.xlu0 %884, %v867
        %v886 = vpop.permute.xlu0 %885
        %v888 = vmul.f32 %v752, %v871
        %v889 = vmul.f32 %v754, %v871
        %v890 = vmul.f32 %v756, %v876
        %v891 = vmul.f32 %v758, %v876
        %v892 = vmul.f32 %v762, %v881
        %v893 = vmul.f32 %v764, %v881
        %v894 = vmul.f32 %v766, %v886
        %v895 = vmul.f32 %v768, %v886
        %v896 = vadd.f32 %v888, %v551
        %v897 = vadd.f32 %v889, %v552
        %v898 = vadd.f32 %v890, %v553
        %v899 = vadd.f32 %v891, %v554
        %v900 = vadd.f32 %v892, %v555
        %v901 = vadd.f32 %v893, %v556
        %v902 = vadd.f32 %v894, %v557
        %v903 = vadd.f32 %v895, %v558
        %s904 = scalar_lea.vmem [#allocation5], 16
        %v905 = vld [vmem:[%s904] sm:$0xf]
        %v906 = vld [vmem:[%s904 + $0x4] sm:$0xf]
        %v907 = vld [vmem:[%s904 + $0x8] sm:$0xf]
        %v908 = vld [vmem:[%s904 + $0xc] sm:$0xf]
        %v909 = vpack.c.bf16 %v898, %v896
        %v910 = vpack.c.bf16 %v899, %v897
        %v911 = vpack.c.bf16 %v902, %v900
        %v912 = vpack.c.bf16 %v903, %v901
        %s913 = scalar_lea.vmem [#allocation7], 32
        %v914 = vld [vmem:[%s913] sm:$0xff]
        %v915 = vld [vmem:[%s913 + $0x8] sm:$0xff]
        %v916 = vld [vmem:[%s913 + $0x10] sm:$0xff]
        %v917 = vld [vmem:[%s913 + $0x18] sm:$0xff]
        %919 = vset.pattern.permute.xlu0 0
        %920 = vperm.xlu0 %919, %v914
        %v921 = vpop.permute.xlu0 %920
        %924 = vset.pattern.permute.xlu0 0
        %925 = vperm.xlu0 %924, %v915
        %v926 = vpop.permute.xlu0 %925
        %929 = vset.pattern.permute.xlu0 0
        %930 = vperm.xlu0 %929, %v916
        %v931 = vpop.permute.xlu0 %930
        %934 = vset.pattern.permute.xlu0 0
        %935 = vperm.xlu0 %934, %v917
        %v936 = vpop.permute.xlu0 %935
        %v942 = vunpack.c.l.b16 %v905
        %v943 = vunpack.c.l.b16 %v906
        %v944 = vunpack.c.l.b16 %v907
        %v945 = vunpack.c.l.b16 %v908
        %v946 = vpack.c.b16 %v943, %v942
        %v947 = vpack.c.b16 %v945, %v944
        %v949 = vsel %vm601, %v946, 0
        %v952 = vsel %vm601, %v947, 0
        %954 = vmatprep.subr.bf16.mxu0 %v910
        %955 = vmatpush1.bf16.msra.mxu0 %v909
        %956 = vmatprep.subr.bf16.mxu0 %v912
        %957 = vmatpush1.bf16.msra.mxu0 %v911
        %958 = vmatprep.subr.bf16.mxu0 0
        %959 = vmatpush1.bf16.msra.mxu0 0
        %960 = vmatprep.subr.bf16.mxu0 0
        %961 = vmatpush1.bf16.msra.mxu0 0
        %962 = vmatprep.subr.bf16.mxu0 0
        %963 = vmatpush1.bf16.msra.mxu0 0
        %964 = vmatprep.subr.bf16.mxu0 0
        %965 = vmatpush1.bf16.msra.mxu0 0
        %966 = vmatprep.subr.bf16.mxu0 0
        %967 = vmatpush1.bf16.msra.mxu0 0
        %968 = vmatprep.subr.bf16.mxu0 0
        %969 = vmatpush1.bf16.msra.mxu0 0
        %970 = vmatprep.subr.bf16.mxu0 0
        %971 = vmatpush1.bf16.msra.mxu0 0
        %972 = vmatprep.subr.bf16.mxu0 0
        %973 = vmatpush1.bf16.msra.mxu0 0
        %974 = vmatprep.subr.bf16.mxu0 0
        %975 = vmatpush1.bf16.msra.mxu0 0
        %976 = vmatprep.subr.bf16.mxu0 0
        %977 = vmatpush1.bf16.msra.mxu0 0
        %978 = vmatprep.subr.bf16.mxu0 0
        %979 = vmatpush1.bf16.msra.mxu0 0
        %980 = vmatprep.subr.bf16.mxu0 0
        %981 = vmatpush1.bf16.msra.mxu0 0
        %982 = vmatprep.subr.bf16.mxu0 0
        %983 = vmatpush1.bf16.msra.mxu0 0
        %984 = vmatprep.subr.bf16.mxu0 0
        %985 = vmatpush1.bf16.msra.mxu0 0
        %986 = vmatprep.mubr.bf16.mxu0 0
        %987 = vmatmul.mubr.bf16.gmra.mrb[0].mxu0 %v949
        %v988 = vpop.f32.mrb[0].mxu0
        %v989 = vadd.f32 %v921, %v988
        %v990 = vpop.f32.mrb[0].mxu0
        %v991 = vadd.f32 %v921, %v990
        %v992 = vpop.f32.mrb[0].mxu0
        %v993 = vadd.f32 %v926, %v992
        %v994 = vpop.f32.mrb[0].mxu0
        %v995 = vadd.f32 %v926, %v994
        %996 = vmatprep.mubr.bf16.mxu0 0
        %997 = vmatmul.mubr.bf16.gmra.mrb[0].mxu0 %v952
        %v998 = vpop.f32.mrb[0].mxu0
        %v999 = vadd.f32 %v931, %v998
        %v1000 = vpop.f32.mrb[0].mxu0
        %v1001 = vadd.f32 %v931, %v1000
        %v1002 = vpop.f32.mrb[0].mxu0
        %v1003 = vadd.f32 %v936, %v1002
        %v1004 = vpop.f32.mrb[0].mxu0
        %v1005 = vadd.f32 %v936, %v1004
        %1006 = vdwg.mxu0
        %v1007 = vmax.f32 %v989, 0.0
        %v1008 = vmax.f32 %v991, 0.0
        %v1009 = vmax.f32 %v993, 0.0
        %v1010 = vmax.f32 %v995, 0.0
        %v1011 = vmax.f32 %v999, 0.0
        %v1012 = vmax.f32 %v1001, 0.0
        %v1013 = vmax.f32 %v1003, 0.0
        %v1014 = vmax.f32 %v1005, 0.0
        %s1015 = scalar_lea.vmem [#allocation8], 16
        %v1016 = vld [vmem:[%s1015] sm:$0xf]
        %v1017 = vld [vmem:[%s1015 + $0x4] sm:$0xf]
        %v1018 = vld [vmem:[%s1015 + $0x8] sm:$0xf]
        %v1019 = vld [vmem:[%s1015 + $0xc] sm:$0xf]
        %v1020 = vpack.c.bf16 %v1009, %v1007
        %v1021 = vpack.c.bf16 %v1010, %v1008
        %v1022 = vpack.c.bf16 %v1013, %v1011
        %v1023 = vpack.c.bf16 %v1014, %v1012
        %s1024 = scalar_lea.vmem [#allocation10], 32
        %v1025 = vld [vmem:[%s1024] sm:$0xff]
        %v1026 = vld [vmem:[%s1024 + $0x8] sm:$0xff]
        %v1027 = vld [vmem:[%s1024 + $0x10] sm:$0xff]
        %v1028 = vld [vmem:[%s1024 + $0x18] sm:$0xff]
        %1030 = vset.pattern.permute.xlu0 0
        %1031 = vperm.xlu0 %1030, %v1025
        %v1032 = vpop.permute.xlu0 %1031
        %1035 = vset.pattern.permute.xlu0 0
        %1036 = vperm.xlu0 %1035, %v1026
        %v1037 = vpop.permute.xlu0 %1036
        %1040 = vset.pattern.permute.xlu0 0
        %1041 = vperm.xlu0 %1040, %v1027
        %v1042 = vpop.permute.xlu0 %1041
        %1045 = vset.pattern.permute.xlu0 0
        %1046 = vperm.xlu0 %1045, %v1028
        %v1047 = vpop.permute.xlu0 %1046
        %v1053 = vunpack.c.l.b16 %v1016
        %v1054 = vunpack.c.l.b16 %v1017
        %v1055 = vunpack.c.l.b16 %v1018
        %v1056 = vunpack.c.l.b16 %v1019
        %v1057 = vpack.c.b16 %v1054, %v1053
        %v1058 = vpack.c.b16 %v1056, %v1055
        %v1060 = vsel %vm601, %v1057, 0
        %v1063 = vsel %vm601, %v1058, 0
        %1065 = vmatprep.subr.bf16.mxu0 %v1021
        %1066 = vmatpush1.bf16.msra.mxu0 %v1020
        %1067 = vmatprep.subr.bf16.mxu0 %v1023
        %1068 = vmatpush1.bf16.msra.mxu0 %v1022
        %1069 = vmatprep.subr.bf16.mxu0 0
        %1070 = vmatpush1.bf16.msra.mxu0 0
        %1071 = vmatprep.subr.bf16.mxu0 0
        %1072 = vmatpush1.bf16.msra.mxu0 0
        %1073 = vmatprep.subr.bf16.mxu0 0
        %1074 = vmatpush1.bf16.msra.mxu0 0
        %1075 = vmatprep.subr.bf16.mxu0 0
        %1076 = vmatpush1.bf16.msra.mxu0 0
        %1077 = vmatprep.subr.bf16.mxu0 0
        %1078 = vmatpush1.bf16.msra.mxu0 0
        %1079 = vmatprep.subr.bf16.mxu0 0
        %1080 = vmatpush1.bf16.msra.mxu0 0
        %1081 = vmatprep.subr.bf16.mxu0 0
        %1082 = vmatpush1.bf16.msra.mxu0 0
        %1083 = vmatprep.subr.bf16.mxu0 0
        %1084 = vmatpush1.bf16.msra.mxu0 0
        %1085 = vmatprep.subr.bf16.mxu0 0
        %1086 = vmatpush1.bf16.msra.mxu0 0
        %1087 = vmatprep.subr.bf16.mxu0 0
        %1088 = vmatpush1.bf16.msra.mxu0 0
        %1089 = vmatprep.subr.bf16.mxu0 0
        %1090 = vmatpush1.bf16.msra.mxu0 0
        %1091 = vmatprep.subr.bf16.mxu0 0
        %1092 = vmatpush1.bf16.msra.mxu0 0
        %1093 = vmatprep.subr.bf16.mxu0 0
        %1094 = vmatpush1.bf16.msra.mxu0 0
        %1095 = vmatprep.subr.bf16.mxu0 0
        %1096 = vmatpush1.bf16.msra.mxu0 0
        %1097 = vmatprep.mubr.bf16.mxu0 0
        %1098 = vmatmul.mubr.bf16.gmra.mrb[0].mxu0 %v1060
        %v1099 = vpop.f32.mrb[0].mxu0
        %v1100 = vadd.f32 %v1032, %v1099
        %v1101 = vpop.f32.mrb[0].mxu0
        %v1102 = vadd.f32 %v1032, %v1101
        %v1103 = vpop.f32.mrb[0].mxu0
        %v1104 = vadd.f32 %v1037, %v1103
        %v1105 = vpop.f32.mrb[0].mxu0
        %v1106 = vadd.f32 %v1037, %v1105
        %1107 = vmatprep.mubr.bf16.mxu0 0
        %1108 = vmatmul.mubr.bf16.gmra.mrb[0].mxu0 %v1063
        %v1109 = vpop.f32.mrb[0].mxu0
        %v1110 = vadd.f32 %v1042, %v1109
        %v1111 = vpop.f32.mrb[0].mxu0
        %v1112 = vadd.f32 %v1042, %v1111
        %v1113 = vpop.f32.mrb[0].mxu0
        %v1114 = vadd.f32 %v1047, %v1113
        %v1115 = vpop.f32.mrb[0].mxu0
        %v1116 = vadd.f32 %v1047, %v1115
        %1117 = vdwg.mxu0
        %v1118 = vadd.f32 %v1100, %v1102
        %1119 = vadd.xlane.f32.xlu0 %v1118
        %v1120 = vpop.xlane.xlu0 %1119
        %v1121 = vadd.f32 %v1104, %v1106
        %1122 = vadd.xlane.f32.xlu0 %v1121
        %v1123 = vpop.xlane.xlu0 %1122
        %v1124 = vadd.f32 %v1110, %v1112
        %1125 = vadd.xlane.f32.xlu0 %v1124
        %v1126 = vpop.xlane.xlu0 %1125
        %v1127 = vadd.f32 %v1114, %v1116
        %1128 = vadd.xlane.f32.xlu0 %v1127
        %v1129 = vpop.xlane.xlu0 %1128
        %v1130 = vmul.f32 %v1120, %v782
        %v1131 = vmul.f32 %v1123, %v782
        %v1132 = vmul.f32 %v1126, %v782
        %v1133 = vmul.f32 %v1129, %v782
        %s1134 = scalar_lea.vmem [#allocation11], 32
        %v1135 = vld [vmem:[%s1134] sm:$0xff]
        %v1136 = vld [vmem:[%s1134 + $0x8] sm:$0xff]
        %v1137 = vld [vmem:[%s1134 + $0x10] sm:$0xff]
        %v1138 = vld [vmem:[%s1134 + $0x18] sm:$0xff]
        %v1139 = vmul.f32 %v1130, %v1135
        %v1140 = vmul.f32 %v1131, %v1136
        %v1141 = vmul.f32 %v1132, %v1137
        %v1142 = vmul.f32 %v1133, %v1138
        %v1143 = vsel %vm795, %v1139, 0.0
        %v1144 = vsel %vm795, %v1140, 0.0
        %v1145 = vadd.f32 %v1143, %v1144
        %v1146 = vsel %vm795, %v1141, 0.0
        %v1147 = vadd.f32 %v1145, %v1146
        %v1148 = vsel %vm795, %v1142, 0.0
        %v1149 = vadd.f32 %v1147, %v1148
        %v1150 = vrot.slane %v1149, 4
        %v1151 = vadd.f32 %v1149, %v1150
        %v1152 = vrot.slane %v1151, 2
        %v1153 = vadd.f32 %v1151, %v1152
        %v1154 = vrot.slane %v1153, 1
        %v1155 = vadd.f32 %v1153, %v1154
        %s1156 = scalar_lea.vmem [#allocation13], 1
        %v1157 = vld [vmem:[%s1156] sm:$0x1]
        %v1158 = vadd.f32 %v1155, %v1157
        %v1159 = vmax.f32 %v1158, 0.0
        %s1160 = scalar_lea.vmem [#allocation14], 32
        %v1161 = vld [vmem:[%s1160] sm:$0xff]
        %v1162 = vld [vmem:[%s1160 + $0x8] sm:$0xff]
        %v1163 = vld [vmem:[%s1160 + $0x10] sm:$0xff]
        %v1164 = vld [vmem:[%s1160 + $0x18] sm:$0xff]
        %v1165 = vlaneseq
        %v1166 = vshrl.u32 %v1165, 7
        %v1167 = vsub.s32 0, %v1166
        %v1168 = vrot.slane %v1159, %v1167
        %v1169 = vmul.f32 %v1168, %v1161
        %v1170 = vmul.f32 %v1168, %v1162
        %v1171 = vmul.f32 %v1168, %v1163
        %v1172 = vmul.f32 %v1168, %v1164
        %v1173 = vsel %vm795, %v1169, 0.0
        %1174 = vadd.xlane.f32.xlu0 %v1173
        %v1175 = vpop.xlane.xlu0 %1174
        %v1176 = vsel %vm795, %v1170, 0.0
        %1177 = vadd.xlane.f32.xlu0 %v1176
        %v1178 = vpop.xlane.xlu0 %1177
        %v1179 = vsel %vm795, %v1171, 0.0
        %1180 = vadd.xlane.f32.xlu0 %v1179
        %v1181 = vpop.xlane.xlu0 %1180
        %v1182 = vsel %vm795, %v1172, 0.0
        %1183 = vadd.xlane.f32.xlu0 %v1182
        %v1184 = vpop.xlane.xlu0 %1183
        %s1185 = scalar_lea.vmem [#allocation16], 32
        %v1186 = vld [vmem:[%s1185] sm:$0xff]
        %v1187 = vld [vmem:[%s1185 + $0x8] sm:$0xff]
        %v1188 = vld [vmem:[%s1185 + $0x10] sm:$0xff]
        %v1189 = vld [vmem:[%s1185 + $0x18] sm:$0xff]
        %v1190 = vadd.f32 %v1175, %v1186
        %v1191 = vadd.f32 %v1178, %v1187
        %v1192 = vadd.f32 %v1181, %v1188
        %v1193 = vadd.f32 %v1184, %v1189
        %v1194 = vxor.u32 %v1190, 2147483648
        %v1195 = vxor.u32 %v1191, 2147483648
        %v1196 = vxor.u32 %v1192, 2147483648
        %v1197 = vxor.u32 %v1193, 2147483648
        %v1198 = vmul.f32 %v1194, 1.442695
        %v1199 = vpow.pop %v1198
        %v1200 = vmul.f32 %v1195, 1.442695
        %v1201 = vpow.pop %v1200
        %v1202 = vmul.f32 %v1196, 1.442695
        %v1203 = vpow.pop %v1202
        %v1204 = vmul.f32 %v1197, 1.442695
        %v1205 = vpow.pop %v1204
        %v1206 = vadd.f32 %v1199, 1.0
        %v1207 = vadd.f32 %v1201, 1.0
        %v1208 = vadd.f32 %v1203, 1.0
        %v1209 = vadd.f32 %v1205, 1.0
        %v1210 = vrcp.pop %v1206
        %v1211 = vmul.f32 1.0, %v1210
        %v1212 = vrcp.pop %v1207
        %v1213 = vmul.f32 1.0, %v1212
        %v1214 = vrcp.pop %v1208
        %v1215 = vmul.f32 1.0, %v1214
        %v1216 = vrcp.pop %v1209
        %v1217 = vmul.f32 1.0, %v1216
        %1219 = vset.pattern.permute.xlu0 0
        %1220 = vperm.xlu0 %1219, %v1211
        %v1221 = vpop.permute.xlu0 %1220
        %1224 = vset.pattern.permute.xlu0 0
        %1225 = vperm.xlu0 %1224, %v1213
        %v1226 = vpop.permute.xlu0 %1225
        %1229 = vset.pattern.permute.xlu0 0
        %1230 = vperm.xlu0 %1229, %v1215
        %v1231 = vpop.permute.xlu0 %1230
        %1234 = vset.pattern.permute.xlu0 0
        %1235 = vperm.xlu0 %1234, %v1217
        %v1236 = vpop.permute.xlu0 %1235
        %v1238 = vmul.f32 %v1100, %v1221
        %v1239 = vmul.f32 %v1102, %v1221
        %v1240 = vmul.f32 %v1104, %v1226
        %v1241 = vmul.f32 %v1106, %v1226
        %v1242 = vmul.f32 %v1110, %v1231
        %v1243 = vmul.f32 %v1112, %v1231
        %v1244 = vmul.f32 %v1114, %v1236
        %v1245 = vmul.f32 %v1116, %v1236
        %v1246 = vadd.f32 %v1238, %v896
        %v1247 = vadd.f32 %v1239, %v897
        %v1248 = vadd.f32 %v1240, %v898
        %v1249 = vadd.f32 %v1241, %v899
        %v1250 = vadd.f32 %v1242, %v900
        %v1251 = vadd.f32 %v1243, %v901
        %v1252 = vadd.f32 %v1244, %v902
        %v1253 = vadd.f32 %v1245, %v903
        %v1254 = vld [vmem:[#allocation17] sm:$0xf]
        %v1255 = vld [vmem:[#allocation17 + $0x4] sm:$0xf]
        %v1256 = vld [vmem:[#allocation17 + $0x8] sm:$0xf]
        %v1257 = vld [vmem:[#allocation17 + $0xc] sm:$0xf]
        %v1258 = vpack.c.bf16 %v1248, %v1246
        %v1259 = vpack.c.bf16 %v1249, %v1247
        %v1260 = vpack.c.bf16 %v1252, %v1250
        %v1261 = vpack.c.bf16 %v1253, %v1251
        %v1262 = vld [vmem:[#allocation19] sm:$0xff]
        %v1263 = vld [vmem:[#allocation19 + $0x8] sm:$0xff]
        %v1264 = vld [vmem:[#allocation19 + $0x10] sm:$0xff]
        %v1265 = vld [vmem:[#allocation19 + $0x18] sm:$0xff]
        %1267 = vset.pattern.permute.xlu0 0
        %1268 = vperm.xlu0 %1267, %v1262
        %v1269 = vpop.permute.xlu0 %1268
        %1272 = vset.pattern.permute.xlu0 0
        %1273 = vperm.xlu0 %1272, %v1263
        %v1274 = vpop.permute.xlu0 %1273
        %1277 = vset.pattern.permute.xlu0 0
        %1278 = vperm.xlu0 %1277, %v1264
        %v1279 = vpop.permute.xlu0 %1278
        %1282 = vset.pattern.permute.xlu0 0
        %1283 = vperm.xlu0 %1282, %v1265
        %v1284 = vpop.permute.xlu0 %1283
        %v1290 = vunpack.c.l.b16 %v1254
        %v1291 = vunpack.c.l.b16 %v1255
        %v1292 = vunpack.c.l.b16 %v1256
        %v1293 = vunpack.c.l.b16 %v1257
        %v1294 = vpack.c.b16 %v1291, %v1290
        %v1295 = vpack.c.b16 %v1293, %v1292
        %v1297 = vsel %vm601, %v1294, 0
        %v1300 = vsel %vm601, %v1295, 0
        %1302 = vmatprep.subr.bf16.mxu0 %v1259
        %1303 = vmatpush1.bf16.msra.mxu0 %v1258
        %1304 = vmatprep.subr.bf16.mxu0 %v1261
        %1305 = vmatpush1.bf16.msra.mxu0 %v1260
        %1306 = vmatprep.subr.bf16.mxu0 0
        %1307 = vmatpush1.bf16.msra.mxu0 0
        %1308 = vmatprep.subr.bf16.mxu0 0
        %1309 = vmatpush1.bf16.msra.mxu0 0
        %1310 = vmatprep.subr.bf16.mxu0 0
        %1311 = vmatpush1.bf16.msra.mxu0 0
        %1312 = vmatprep.subr.bf16.mxu0 0
        %1313 = vmatpush1.bf16.msra.mxu0 0
        %1314 = vmatprep.subr.bf16.mxu0 0
        %1315 = vmatpush1.bf16.msra.mxu0 0
        %1316 = vmatprep.subr.bf16.mxu0 0
        %1317 = vmatpush1.bf16.msra.mxu0 0
        %1318 = vmatprep.subr.bf16.mxu0 0
        %1319 = vmatpush1.bf16.msra.mxu0 0
        %1320 = vmatprep.subr.bf16.mxu0 0
        %1321 = vmatpush1.bf16.msra.mxu0 0
        %1322 = vmatprep.subr.bf16.mxu0 0
        %1323 = vmatpush1.bf16.msra.mxu0 0
        %1324 = vmatprep.subr.bf16.mxu0 0
        %1325 = vmatpush1.bf16.msra.mxu0 0
        %1326 = vmatprep.subr.bf16.mxu0 0
        %1327 = vmatpush1.bf16.msra.mxu0 0
        %1328 = vmatprep.subr.bf16.mxu0 0
        %1329 = vmatpush1.bf16.msra.mxu0 0
        %1330 = vmatprep.subr.bf16.mxu0 0
        %1331 = vmatpush1.bf16.msra.mxu0 0
        %1332 = vmatprep.subr.bf16.mxu0 0
        %1333 = vmatpush1.bf16.msra.mxu0 0
        %1334 = vmatprep.mubr.bf16.mxu0 0
        %1335 = vmatmul.mubr.bf16.gmra.mrb[0].mxu0 %v1297
        %v1336 = vpop.f32.mrb[0].mxu0
        %v1337 = vadd.f32 %v1269, %v1336
        %v1338 = vpop.f32.mrb[0].mxu0
        %v1339 = vadd.f32 %v1269, %v1338
        %v1340 = vpop.f32.mrb[0].mxu0
        %v1341 = vadd.f32 %v1274, %v1340
        %v1342 = vpop.f32.mrb[0].mxu0
        %v1343 = vadd.f32 %v1274, %v1342
        %1344 = vmatprep.mubr.bf16.mxu0 0
        %1345 = vmatmul.mubr.bf16.gmra.mrb[0].mxu0 %v1300
        %v1346 = vpop.f32.mrb[0].mxu0
        %v1347 = vadd.f32 %v1279, %v1346
        %v1348 = vpop.f32.mrb[0].mxu0
        %v1349 = vadd.f32 %v1279, %v1348
        %v1350 = vpop.f32.mrb[0].mxu0
        %v1351 = vadd.f32 %v1284, %v1350
        %v1352 = vpop.f32.mrb[0].mxu0
        %v1353 = vadd.f32 %v1284, %v1352
        %1354 = vdwg.mxu0
        %v1355 = vadd.f32 %v1337, %v551
        %v1356 = vadd.f32 %v1339, %v552
        %v1357 = vadd.f32 %v1341, %v553
        %v1358 = vadd.f32 %v1343, %v554
        %v1359 = vadd.f32 %v1347, %v555
        %v1360 = vadd.f32 %v1349, %v556
        %v1361 = vadd.f32 %v1351, %v557
        %v1362 = vadd.f32 %v1353, %v558
        %1363 = vst [vmem:[%s549] sm:$0xff] %v1355
        %1364 = vst [vmem:[%s549 + $0x8] sm:$0xff] %v1356
        %1365 = vst [vmem:[%s549 + $0x10] sm:$0xff] %v1357
        %1366 = vst [vmem:[%s549 + $0x18] sm:$0xff] %v1358
        %1367 = vst [vmem:[%s549 + $0x20] sm:$0xff] %v1359
        %1368 = vst [vmem:[%s549 + $0x28] sm:$0xff] %v1360
        %1369 = vst [vmem:[%s549 + $0x30] sm:$0xff] %v1361
        %1370 = vst [vmem:[%s549 + $0x38] sm:$0xff] %v1362
        %s1371 = sand.u32 %s277, 1
        %s1372 = scalar_lea.sflag [#allocation4], %s1371
        %s1373 = sand.u32 %s277, 1
        %s1374 = smul.addr %s1373, 64
        %s1375 = scalar_lea.vmem [#allocation20], %s1374
        // Predicated region
        $region109: #{tpu_custom_call.1} parent=63 // pred_check
          %p1376 = pneg %p287
        $region110: #{tpu_custom_call.1} parent=63 // pred_check_branch
          %1378 = sbr.rel (%p1376) target = $region112
        $region111: #{tpu_custom_call.1} parent=63 // pred_region
          %s1380 = ssub.s32 1024, 1024
          %1381 = vsyncadd %s1372, %s1380
          %s1382 = smul.addr %s33, 8
          %s1383 = smul.addr %s1382, 128
          %s1384 = scalar_lea.hbm %s11, %s1383
          %s1385 = sshll.u32 %s1375, 4
          %s1386 = int_to_ptr.vmem [resolvable:$true] %s1385
          %1391 = dma.vmem_to_hbm [thread:$0]  %s1386, 1024, %s1384, %s1372, 256, 256, 16
        $region112: #{tpu_custom_call.1} parent=63 // pred_fallthru
          _
      $region64: #{tpu_custom_call.1} parent=5 // pred_fallthru
        _
      %p1392 = scmp.le.s32.totalorder 2, %s28
      // Predicated region
      $region113: #{tpu_custom_call.1} parent=5 // pred_check
        %p1393 = pneg %p1392
      $region114: #{tpu_custom_call.1} parent=5 // pred_check_branch
        %1395 = sbr.rel (%p1393) target = $region116
      $region115: #{tpu_custom_call.1} parent=5 // pred_region
        %s1396 = ssub.s32 %s28, 2
        // Predicated region
        $region117: #{tpu_custom_call.1} parent=115 // pred_check
          %p1397 = pneg %p293
        $region118: #{tpu_custom_call.1} parent=115 // pred_check_branch
          %1399 = sbr.rel (%p1397) target = $region120
        $region119: #{tpu_custom_call.1} parent=115 // pred_region
          %s1400 = sand.u32 %s278, 1
          %s1401 = scalar_lea.sflag [#allocation4], %s1400
          %s1402 = sand.u32 %s278, 1
          %s1403 = smul.addr %s1402, 64
          %s1404 = scalar_lea.vmem [#allocation20], %s1403
          %1405 = dma.done %s1401, 1024
        $region120: #{tpu_custom_call.1} parent=115 // pred_fallthru
          _
      $region116: #{tpu_custom_call.1} parent=5 // pred_fallthru
        _
    $region6: #{tpu_custom_call.1} parent=1 // loop_footer
      %s32 = sadd.s32 1, %s28
    $region7: #{tpu_custom_call.1} parent=1 // loop_footer_branch
      %27 = sbr.rel target = $region3
    $region8: #{tpu_custom_call.1} parent=1 // loop_exit
      _
    %1406 = vsyncpa [#allocation3], 1
    %s1407 = scalar_lea.sflag [#allocation3], 1
    %1408 = vsyncpa %s1407, 1
    %1409 = vsyncpa [#allocation6], 1
    %1410 = vsyncpa [#allocation9], 1
    %1411 = vsyncpa [#allocation12], 1
    %1412 = vsyncpa [#allocation15], 1
    %1413 = vsyncpa [#allocation18], 1
    %1414 = vsyncpa [#allocation4], 1
    %s1415 = scalar_lea.sflag [#allocation4], 1
    %1416 = vsyncpa %s1415, 1

</llo_original>
